<compile_context>
chip_gen: v5e
topology: v5e:2x2
jax: 0.10.0
libtpu: 0.0.40
codegen_flags: <defaults>
</compile_context>

<pallas_src>
import math

import jax
import jax.numpy as jnp
from jax import lax
from jax.experimental import pallas as pl
from jax.experimental.pallas import tpu as pltpu


_MM_DTYPE = jnp.bfloat16     # matmul operands + recurrent carry (accumulation stays f32)
_OUT_DTYPE = jnp.bfloat16    # kernel outputs / staged projection


def _cdiv(a, b):
    return -(-a // b)


def _round_up(x, m):
    return ((x + m - 1) // m) * m


def _snap_up(v):
    """Round a batch-tile size up to 16 / 32 / multiple-of-64 (keeps sub-tiles 16-row aligned)."""
    if v > 32:
        return _round_up(v, 64)
    if v > 16:
        return 32
    return 16


def _snap_down(v):
    if v >= 64:
        return (v // 64) * 64
    if v >= 32:
        return 32
    return 16


def _vmem_capacity_bytes():
    try:
        info = pltpu.get_tpu_info()
        for attr in ("vmem_capacity_bytes", "vmem_size_bytes", "vmem_bytes"):
            val = getattr(info, attr, None)
            if val:
                return int(val)
    except Exception:
        pass
    return 64 * 1024 * 1024     # conservative (v7x per-TC)


def _is_multi_tensorcore():
    try:
        kind = jax.devices()[0].device_kind.lower()
    except Exception:
        return False
    return any(tag in kind for tag in ("v7", "v4", "v5p"))


_VMEM_CAP = _vmem_capacity_bytes()
_MULTI_TC = _is_multi_tensorcore()
_VMEM_LIMIT = max(32 * 1024 * 1024,
                  min((_VMEM_CAP * 3) // 4, 100 * 1024 * 1024))


def _pick_block_b(B, T, f_in, kh):
    """Chip-aware batch-tile size + padded batch extent."""
    budget = _VMEM_CAP // 4                       # working-set budget for one grid step
    fixed = (2 * f_in * kh + 2 * kh * kh) * 2 + 2 * kh * 4   # weights (bf16) + biases (f32)
    per_row = (2 * T * f_in * 2                   # double-buffered bf16 input block
               + 2 * 2 * T * kh * 2               # 2 dirs x double-buffered bf16 output blocks
               + 2 * T * kh * 4                   # f32 projection temporaries
               + 2 * kh * (2 + 4))                # recurrent carries + f32 tanh temps
    fit = max(16, ((max(budget - fixed, per_row * 16)) // per_row) // 16 * 16)
    fit = min(fit, 1024)

    # Bound padding waste: choose ~ceil(B / n_tiles) rather than blindly padding to `fit`.
    n_tiles = _cdiv(B, fit)
    block_b = min(_snap_up(_cdiv(B, n_tiles)), _snap_up(fit))
    b_pad = _round_up(B, block_b)

    # On multi-TensorCore chips make sure the "parallel" grid has >= 2 tiles.
    if _MULTI_TC and (b_pad // block_b) < 2 and b_pad >= 32:
        block_b = _snap_down(b_pad // 2)
        b_pad = _round_up(B, block_b)
    return block_b, b_pad


def _blockdiag(w):
    """(K, A, B) per-head blocks -> (K*A, K*B) block-diagonal matrix."""
    K, A, Bd = w.shape
    eye = jnp.eye(K, dtype=w.dtype)
    return (eye[:, None, :, None] * w[:, :, None, :]).reshape(K * A, K * Bd)


def _fuse_rnn_params(wih_f, whh_f, b_f, wih_b, whh_b, b_b):
    """Per-head bidirectional RNN weights -> fused per-direction block matrices.

    Feature layout is head-major everywhere; bias is the combined b_ih + b_hh.
    """
    return (_blockdiag(wih_f), _blockdiag(wih_b),
            _blockdiag(whh_f), _blockdiag(whh_b),
            b_f.reshape(1, -1), b_b.reshape(1, -1))


# ----------------------------------------------------------------------------
# Pallas kernel: fused all-heads bidirectional tanh RNN, direction-major outputs.
#   x_ref     : (T, Bt, F_in)  bf16, time-major, head-major features
#   wih_{f,b} : (F_in, KH)     bf16 block-diag input projection per direction
#   whh_{f,b} : (KH, KH)       bf16 block-diag hidden->hidden per direction
#   b_{f,b}   : (1, KH)        f32  (b_ih + b_hh)
#   out_{f,b} : (T, Bt, KH)    bf16 (projection staged here, overwritten by h)
# ----------------------------------------------------------------------------
def _make_birnn_kernel(nsub):
    def kernel(x_ref, wihf_ref, wihb_ref, whhf_ref, whhb_ref,
               bf_ref, bb_ref, out_f_ref, out_b_ref):
        T, Bt, f_in = x_ref.shape
        kh = out_f_ref.shape[-1]
        bsub = Bt // nsub

        wih_f = wihf_ref[...]
        wih_b = wihb_ref[...]
        whh_f = whhf_ref[...]
        whh_b = whhb_ref[...]

        # Hoisted input projection: one big MXU matmul per direction covering every
        # timestep and head, staged directly in the lane-dense per-direction outputs.
        x2d = x_ref[...].reshape(T * Bt, f_in)
        z_f = jnp.dot(x2d, wih_f, preferred_element_type=jnp.float32) + bf_ref[...]
        out_f_ref[...] = z_f.reshape(T, Bt, kh).astype(out_f_ref.dtype)
        z_b = jnp.dot(x2d, wih_b, preferred_element_type=jnp.float32) + bb_ref[...]
        out_b_ref[...] = z_b.reshape(T, Bt, kh).astype(out_b_ref.dtype)

        h0 = jnp.zeros((bsub, kh), _MM_DTYPE)

        def step(t, carry):
            tb = T - 1 - t
            new = []
            # All 2*nsub matmuls below are independent -> the MXU pipelines them,
            # hiding the serial matmul -> tanh latency of each chain.
            for s in range(nsub):
                h_f = carry[2 * s]
                h_b = carry[2 * s + 1]
                rows = pl.ds(s * bsub, bsub)
                zf = out_f_ref[t, rows, :].astype(jnp.float32)
                zb = out_b_ref[tb, rows, :].astype(jnp.float32)
                hf = jnp.tanh(
                    zf + jnp.dot(h_f, whh_f, preferred_element_type=jnp.float32)
                ).astype(_MM_DTYPE)
                hb = jnp.tanh(
                    zb + jnp.dot(h_b, whh_b, preferred_element_type=jnp.float32)
                ).astype(_MM_DTYPE)
                out_f_ref[t, rows, :] = hf.astype(out_f_ref.dtype)
                out_b_ref[tb, rows, :] = hb.astype(out_b_ref.dtype)
                new.append(hf)
                new.append(hb)
            return tuple(new)

        unroll = True if T <= 32 else 4
        lax.fori_loop(0, T, step, (h0,) * (2 * nsub), unroll=unroll)

    return kernel


def birnn_fused_pallas(x, wih_f, wih_b, whh_f, whh_b, bias_f, bias_b):
    """x: (T, B, F_in) -> (out_fwd, out_bwd), each (T, B, K*H) bf16."""
    T, B, f_in = x.shape
    kh = whh_f.shape[-1]

    block_b, b_pad = _pick_block_b(B, T, f_in, kh)
    if b_pad > B:
        x = jnp.pad(x, ((0, 0), (0, b_pad - B), (0, 0)))

    x = x.astype(_MM_DTYPE)
    wih_f = wih_f.astype(_MM_DTYPE)
    wih_b = wih_b.astype(_MM_DTYPE)
    whh_f = whh_f.astype(_MM_DTYPE)
    whh_b = whh_b.astype(_MM_DTYPE)
    bias_f = bias_f.astype(jnp.float32)
    bias_b = bias_b.astype(jnp.float32)

    nsub = max(1, min(4, block_b // 16))     # 16-row-aligned sub-tiles by construction

    out_f, out_b = pl.pallas_call(
        _make_birnn_kernel(nsub),
        out_shape=(jax.ShapeDtypeStruct((T, b_pad, kh), _OUT_DTYPE),
                   jax.ShapeDtypeStruct((T, b_pad, kh), _OUT_DTYPE)),
        grid=(b_pad // block_b,),
        in_specs=[
            pl.BlockSpec((T, block_b, f_in), lambda i: (0, i, 0)),
            pl.BlockSpec((f_in, kh), lambda i: (0, 0)),
            pl.BlockSpec((f_in, kh), lambda i: (0, 0)),
            pl.BlockSpec((kh, kh), lambda i: (0, 0)),
            pl.BlockSpec((kh, kh), lambda i: (0, 0)),
            pl.BlockSpec((1, kh), lambda i: (0, 0)),
            pl.BlockSpec((1, kh), lambda i: (0, 0)),
        ],
        out_specs=[
            pl.BlockSpec((T, block_b, kh), lambda i: (0, i, 0)),
            pl.BlockSpec((T, block_b, kh), lambda i: (0, i, 0)),
        ],
        compiler_params=pltpu.CompilerParams(
            dimension_semantics=("parallel",),
            vmem_limit_bytes=_VMEM_LIMIT),
    )(x, wih_f, wih_b, whh_f, whh_b, bias_f, bias_b)
    return out_f[:, :B], out_b[:, :B]


# ----------------------------------------------------------------------------
# Full forward pass of ShortSeqRNNOld (key=None, value=None path).
# ----------------------------------------------------------------------------
def short_seq_rnn_old_forward(query, params, heads, kernel_size):
    bs, seqlen, hidden = query.shape
    K = heads
    assert hidden % (2 * K) == 0
    H = hidden // (2 * K)
    T = kernel_size
    assert T >= 2, "kernel_size must be >= 2 (segment summary uses tokens 0 and T-2)"
    ns = _cdiv(seqlen, T)
    target_len = ns * T
    if target_len > seqlen:
        query = jnp.pad(query, ((0, 0), (0, target_len - seqlen), (0, 0)))

    # --- stage 1: per-head bidirectional RNN over each kernel_size segment ---
    # (bs, ns*T, hidden) -> (T, bs*ns, hidden), time-major, head-major features.
    x1 = jnp.transpose(query.reshape(bs * ns, T, hidden), (1, 0, 2))
    p1 = _fuse_rnn_params(params['g_wih_f'], params['g_whh_f'], params['g_b_f'],
                          params['g_wih_b'], params['g_whh_b'], params['g_b_b'])
    y1_f, y1_b = birnn_fused_pallas(x1, *p1)          # each (T, bs*ns, K*H) bf16

    # --- stage 2: global RNN over segment summaries (mean of tokens 0 and T-2) ---
    B1 = bs * ns
    qg_f = 0.5 * (y1_f[0].astype(jnp.float32) + y1_f[T - 2].astype(jnp.float32))
    qg_b = 0.5 * (y1_b[0].astype(jnp.float32) + y1_b[T - 2].astype(jnp.float32))
    # per-head input layout of the stage-2 RNN: head k -> [fwd_k | bwd_k]
    qg = jnp.stack([qg_f.reshape(B1, K, H), qg_b.reshape(B1, K, H)], axis=2)
    x2 = jnp.transpose(qg.reshape(bs, ns, hidden), (1, 0, 2))      # (ns, bs, hidden)
    p2 = _fuse_rnn_params(params['gg_wih_f'], params['gg_whh_f'], params['gg_b_f'],
                          params['gg_wih_b'], params['gg_whh_b'], params['gg_b_b'])
    y2_f, y2_b = birnn_fused_pallas(x2, *p2)          # each (ns, bs, K*H) bf16

    # broadcast-add the per-segment global summary onto every token of its segment
    y2_f = jnp.transpose(y2_f, (1, 0, 2)).reshape(bs, ns, K, H).astype(jnp.float32)
    y2_b = jnp.transpose(y2_b, (1, 0, 2)).reshape(bs, ns, K, H).astype(jnp.float32)
    q_f = y1_f.reshape(T, bs, ns, K, H).astype(jnp.float32) + y2_f[None]
    q_b = y1_b.reshape(T, bs, ns, K, H).astype(jnp.float32) + y2_b[None]

    # head/time-mixing reshape: position j = s*T*K + t*K + k, feature = [fwd_k | bwd_k]
    q = jnp.stack([q_f, q_b], axis=4)                 # (T, bs, ns, K, 2, H)
    q = jnp.transpose(q, (1, 2, 0, 3, 4, 5))          # (bs, ns, T, K, 2, H)
    q = q.reshape(bs, ns * T * K, 2 * H)[:, :seqlen]
    return q


# ----------------------------------------------------------------------------
# Pure-JAX reference (mirrors the PyTorch per-head view/permute semantics; the
# arithmetic precision chain matches the kernel: bf16 operands/staging/carry,
# f32 accumulation and tanh).
# ----------------------------------------------------------------------------
def _birnn_ref(x, wihf, whhf, bf, wihb, whhb, bb):
    K, T, B, _ = x.shape
    H = wihf.shape[-1]
    xc = x.astype(_MM_DTYPE)
    zf = (jnp.einsum('ktbi,kio->ktbo', xc, wihf.astype(_MM_DTYPE),
                     preferred_element_type=jnp.float32) + bf[:, None]).astype(_OUT_DTYPE)
    zb = (jnp.einsum('ktbi,kio->ktbo', xc, wihb.astype(_MM_DTYPE),
                     preferred_element_type=jnp.float32) + bb[:, None]).astype(_OUT_DTYPE)
    hf = jnp.zeros((K, B, H), _MM_DTYPE)
    hb = jnp.zeros((K, B, H), _MM_DTYPE)
    outf = [None] * T
    outb = [None] * T
    for t in range(T):
        hf = jnp.tanh(zf[:, t].astype(jnp.float32) + jnp.einsum(
            'kbh,kho->kbo', hf, whhf.astype(_MM_DTYPE),
            preferred_element_type=jnp.float32)).astype(_MM_DTYPE)
        outf[t] = hf
    for i in range(T):
        t = T - 1 - i
        hb = jnp.tanh(zb[:, t].astype(jnp.float32) + jnp.einsum(
            'kbh,kho->kbo', hb, whhb.astype(_MM_DTYPE),
            preferred_element_type=jnp.float32)).astype(_MM_DTYPE)
        outb[t] = hb
    return jnp.stack(outf, axis=1), jnp.stack(outb, axis=1)


def short_seq_rnn_old_reference(query, params, heads, kernel_size):
    bs, seqlen, hidden = query.shape
    D = hidden // heads
    T = kernel_size
    ns = _cdiv(seqlen, T)
    target_len = ns * T
    if target_len > seqlen:
        query = jnp.pad(query, ((0, 0), (0, target_len - seqlen), (0, 0)))

    q0 = query.reshape(bs * ns, T, heads, D).transpose(2, 0, 1, 3)   # (K, B, T, D)
    x1 = q0.transpose(0, 2, 1, 3)                                    # (K, T, B, D)
    of, ob = _birnn_ref(x1, params['g_wih_f'], params['g_whh_f'], params['g_b_f'],
                        params['g_wih_b'], params['g_whh_b'], params['g_b_b'])
    y1 = jnp.concatenate([of.astype(jnp.float32), ob.astype(jnp.float32)], axis=-1)
    q = y1.transpose(0, 2, 1, 3).reshape(heads, bs, ns, T, D)

    qg = 0.5 * (q[:, :, :, 0, :] + q[:, :, :, T - 2, :])             # (K, bs, ns, D)
    x2 = qg.transpose(0, 2, 1, 3)                                    # (K, ns, bs, D)
    of2, ob2 = _birnn_ref(x2, params['gg_wih_f'], params['gg_whh_f'], params['gg_b_f'],
                          params['gg_wih_b'], params['gg_whh_b'], params['gg_b_b'])
    y2 = jnp.concatenate([of2.astype(jnp.float32), ob2.astype(jnp.float32)], axis=-1)
    qg2 = y2.transpose(0, 2, 1, 3)                                   # (K, bs, ns, D)

    q = q + qg2[:, :, :, None, :]
    q = q.reshape(heads, bs * ns, T, D).transpose(1, 2, 0, 3).reshape(-1, T, D)
    q = q.reshape(bs, -1, D)[:, :seqlen]
    return q


def init_params(key, heads, hidden):
    D = hidden // heads                    # RNN input size per head
    H = hidden // (2 * heads)              # RNN hidden size per direction
    keys = jax.random.split(key, 12)
    scale = 1.0 / math.sqrt(H)

    def u(k, shape):
        return jax.random.uniform(k, shape, jnp.float32, -scale, scale)

    return dict(
        # self.gru (per-segment RNNs); bias = b_ih + b_hh combined
        g_wih_f=u(keys[0], (heads, D, H)),
        g_whh_f=u(keys[1], (heads, H, H)),
        g_b_f=u(keys[2], (heads, 1, H)),
        g_wih_b=u(keys[3], (heads, D, H)),
        g_whh_b=u(keys[4], (heads, H, H)),
        g_b_b=u(keys[5], (heads, 1, H)),
        # self.gru_global (over-segment RNNs, maintain_dim=True)
        gg_wih_f=u(keys[6], (heads, D, H)),
        gg_whh_f=u(keys[7], (heads, H, H)),
        gg_b_f=u(keys[8], (heads, 1, H)),
        gg_wih_b=u(keys[9], (heads, D, H)),
        gg_whh_b=u(keys[10], (heads, H, H)),
        gg_b_b=u(keys[11], (heads, 1, H)),
    )


if __name__ == "__main__":
    # Small shapes consistent with the module: hidden % (2*heads) == 0.
    bs, seqlen, hidden = 2, 16, 32
    heads, kernel_size = 2, 8

    key = jax.random.PRNGKey(0)
    kq, kp = jax.random.split(key)
    query = jax.random.normal(kq, (bs, seqlen, hidden), jnp.float32)
    params = init_params(kp, heads, hidden)

    fwd = jax.jit(lambda q: short_seq_rnn_old_forward(q, params, heads, kernel_size))
    out = jax.block_until_ready(fwd(query))

    ref = jax.block_until_ready(
        short_seq_rnn_old_reference(query, params, heads, kernel_size))

    assert out.shape == (bs, seqlen, hidden // heads), out.shape
    assert bool(jnp.all(jnp.isfinite(out)))
    max_err = float(jnp.max(jnp.abs(out - ref)))
    assert bool(jnp.allclose(out, ref, atol=2e-2, rtol=2e-2)), max_err
    print("KERNEL_OK")
</pallas_src>

<mosaic_0001>
module attributes {stable_mosaic.version = 11 : i64} {
  func.func @kernel(%arg0: i32, %arg1: memref<2x16x32xbf16, #tpu.memory_space<vmem>>, %arg2: memref<32x16xbf16, #tpu.memory_space<vmem>>, %arg3: memref<32x16xbf16, #tpu.memory_space<vmem>>, %arg4: memref<16x16xbf16, #tpu.memory_space<vmem>>, %arg5: memref<16x16xbf16, #tpu.memory_space<vmem>>, %arg6: memref<1x16xf32, #tpu.memory_space<vmem>>, %arg7: memref<1x16xf32, #tpu.memory_space<vmem>>, %arg8: memref<2x16x16xbf16, #tpu.memory_space<vmem>>, %arg9: memref<2x16x16xbf16, #tpu.memory_space<vmem>>) attributes {dimension_semantics = [#tpu.dimension_semantics<parallel>], iteration_bounds = array<i64: 1>, scalar_prefetch = 0 : i64, scratch_operands = 0 : i64, tpu.core_type = #tpu.core_type<tc>, window_params = [{transform_indices = @transform_0, window_bounds = array<i64: 2, 16, 32>}, {pipeline_mode = #tpu.pipeline_mode<synchronous>, transform_indices = @transform_1, window_bounds = array<i64: 32, 16>}, {pipeline_mode = #tpu.pipeline_mode<synchronous>, transform_indices = @transform_2, window_bounds = array<i64: 32, 16>}, {pipeline_mode = #tpu.pipeline_mode<synchronous>, transform_indices = @transform_3, window_bounds = array<i64: 16, 16>}, {pipeline_mode = #tpu.pipeline_mode<synchronous>, transform_indices = @transform_4, window_bounds = array<i64: 16, 16>}, {pipeline_mode = #tpu.pipeline_mode<synchronous>, transform_indices = @transform_5, window_bounds = array<i64: 1, 16>}, {pipeline_mode = #tpu.pipeline_mode<synchronous>, transform_indices = @transform_6, window_bounds = array<i64: 1, 16>}, {transform_indices = @transform_7, window_bounds = array<i64: 2, 16, 16>}, {transform_indices = @transform_8, window_bounds = array<i64: 2, 16, 16>}]} {
    %c0 = arith.constant 0 : index
    %c0_0 = arith.constant 0 : index
    %0 = vector.load %arg2[%c0, %c0_0] : memref<32x16xbf16, #tpu.memory_space<vmem>>, vector<32x16xbf16>
    %c0_1 = arith.constant 0 : index
    %c0_2 = arith.constant 0 : index
    %1 = vector.load %arg3[%c0_1, %c0_2] : memref<32x16xbf16, #tpu.memory_space<vmem>>, vector<32x16xbf16>
    %c0_3 = arith.constant 0 : index
    %c0_4 = arith.constant 0 : index
    %2 = vector.load %arg4[%c0_3, %c0_4] : memref<16x16xbf16, #tpu.memory_space<vmem>>, vector<16x16xbf16>
    %c0_5 = arith.constant 0 : index
    %c0_6 = arith.constant 0 : index
    %3 = vector.load %arg5[%c0_5, %c0_6] : memref<16x16xbf16, #tpu.memory_space<vmem>>, vector<16x16xbf16>
    %c0_7 = arith.constant 0 : index
    %c0_8 = arith.constant 0 : index
    %c0_9 = arith.constant 0 : index
    %4 = vector.load %arg1[%c0_7, %c0_8, %c0_9] : memref<2x16x32xbf16, #tpu.memory_space<vmem>>, vector<2x16x32xbf16>
    %5 = vector.shape_cast %4 : vector<2x16x32xbf16> to vector<32x32xbf16>
    %cst = arith.constant dense<0.000000e+00> : vector<32x16xf32>
    %6 = tpu.matmul %5, %0, %cst {dimension_numbers = #tpu.dot_dimension_numbers<[1], [0], [0], [1], [0, 0, 1, 1], [], []>} : vector<32x32xbf16>, vector<32x16xbf16>, vector<32x16xf32> -> vector<32x16xf32>
    %c0_10 = arith.constant 0 : index
    %c0_11 = arith.constant 0 : index
    %7 = vector.load %arg6[%c0_10, %c0_11] : memref<1x16xf32, #tpu.memory_space<vmem>>, vector<1x16xf32>
    %8 = vector.broadcast %7 : vector<1x16xf32> to vector<32x16xf32>
    %9 = arith.addf %6, %8 : vector<32x16xf32>
    %10 = vector.shape_cast %9 : vector<32x16xf32> to vector<2x16x16xf32>
    %11 = arith.truncf %10 : vector<2x16x16xf32> to vector<2x16x16xbf16>
    %c0_12 = arith.constant 0 : index
    %c0_13 = arith.constant 0 : index
    %c0_14 = arith.constant 0 : index
    %12 = vector.load %arg8[%c0_12, %c0_13, %c0_14] : memref<2x16x16xbf16, #tpu.memory_space<vmem>>, vector<2x16x16xbf16>
    tpu.vector_store %arg8[%c0_12, %c0_13, %c0_14], %11 {strides = array<i32>} : memref<2x16x16xbf16, #tpu.memory_space<vmem>>, vector<2x16x16xbf16>,
    %cst_15 = arith.constant dense<0.000000e+00> : vector<32x16xf32>
    %13 = tpu.matmul %5, %1, %cst_15 {dimension_numbers = #tpu.dot_dimension_numbers<[1], [0], [0], [1], [0, 0, 1, 1], [], []>} : vector<32x32xbf16>, vector<32x16xbf16>, vector<32x16xf32> -> vector<32x16xf32>
    %c0_16 = arith.constant 0 : index
    %c0_17 = arith.constant 0 : index
    %14 = vector.load %arg7[%c0_16, %c0_17] : memref<1x16xf32, #tpu.memory_space<vmem>>, vector<1x16xf32>
    %15 = vector.broadcast %14 : vector<1x16xf32> to vector<32x16xf32>
    %16 = arith.addf %13, %15 : vector<32x16xf32>
    %17 = vector.shape_cast %16 : vector<32x16xf32> to vector<2x16x16xf32>
    %18 = arith.truncf %17 : vector<2x16x16xf32> to vector<2x16x16xbf16>
    %c0_18 = arith.constant 0 : index
    %c0_19 = arith.constant 0 : index
    %c0_20 = arith.constant 0 : index
    %19 = vector.load %arg9[%c0_18, %c0_19, %c0_20] : memref<2x16x16xbf16, #tpu.memory_space<vmem>>, vector<2x16x16xbf16>
    tpu.vector_store %arg9[%c0_18, %c0_19, %c0_20], %18 {strides = array<i32>} : memref<2x16x16xbf16, #tpu.memory_space<vmem>>, vector<2x16x16xbf16>,
    %cst_21 = arith.constant 0.000000e+00 : bf16
    %20 = vector.broadcast %cst_21 : bf16 to vector<16x16xbf16>
    %c0_i32 = arith.constant 0 : i32
    %c1_i32 = arith.constant 1 : i32
    %21 = arith.subi %c1_i32, %c0_i32 : i32
    %22 = arith.index_cast %c0_i32 : i32 to index
    %c0_22 = arith.constant 0 : index
    %c0_23 = arith.constant 0 : index
    %23 = vector.load %arg8[%22, %c0_22, %c0_23] : memref<2x16x16xbf16, #tpu.memory_space<vmem>>, vector<1x16x16xbf16>
    %24 = vector.shape_cast %23 : vector<1x16x16xbf16> to vector<16x16xbf16>
    %25 = arith.extf %24 : vector<16x16xbf16> to vector<16x16xf32>
    %26 = arith.index_cast %21 : i32 to index
    %c0_24 = arith.constant 0 : index
    %c0_25 = arith.constant 0 : index
    %27 = vector.load %arg9[%26, %c0_24, %c0_25] : memref<2x16x16xbf16, #tpu.memory_space<vmem>>, vector<1x16x16xbf16>
    %28 = vector.shape_cast %27 : vector<1x16x16xbf16> to vector<16x16xbf16>
    %29 = arith.extf %28 : vector<16x16xbf16> to vector<16x16xf32>
    %cst_26 = arith.constant dense<0.000000e+00> : vector<16x16xf32>
    %30 = tpu.matmul %20, %2, %cst_26 {dimension_numbers = #tpu.dot_dimension_numbers<[1], [0], [0], [1], [0, 0, 1, 1], [], []>} : vector<16x16xbf16>, vector<16x16xbf16>, vector<16x16xf32> -> vector<16x16xf32>
    %31 = arith.addf %25, %30 : vector<16x16xf32>
    %32 = math.tanh %31 : vector<16x16xf32>
    %33 = arith.truncf %32 : vector<16x16xf32> to vector<16x16xbf16>
    %cst_27 = arith.constant dense<0.000000e+00> : vector<16x16xf32>
    %34 = tpu.matmul %20, %3, %cst_27 {dimension_numbers = #tpu.dot_dimension_numbers<[1], [0], [0], [1], [0, 0, 1, 1], [], []>} : vector<16x16xbf16>, vector<16x16xbf16>, vector<16x16xf32> -> vector<16x16xf32>
    %35 = arith.addf %29, %34 : vector<16x16xf32>
    %36 = math.tanh %35 : vector<16x16xf32>
    %37 = arith.truncf %36 : vector<16x16xf32> to vector<16x16xbf16>
    %38 = arith.index_cast %c0_i32 : i32 to index
    %c0_28 = arith.constant 0 : index
    %c0_29 = arith.constant 0 : index
    %39 = vector.load %arg8[%38, %c0_28, %c0_29] : memref<2x16x16xbf16, #tpu.memory_space<vmem>>, vector<1x16x16xbf16>
    %40 = vector.shape_cast %39 : vector<1x16x16xbf16> to vector<16x16xbf16>
    %41 = vector.shape_cast %33 : vector<16x16xbf16> to vector<1x16x16xbf16>
    tpu.vector_store %arg8[%38, %c0_28, %c0_29], %41 {strides = array<i32>} : memref<2x16x16xbf16, #tpu.memory_space<vmem>>, vector<1x16x16xbf16>,
    %42 = arith.index_cast %21 : i32 to index
    %c0_30 = arith.constant 0 : index
    %c0_31 = arith.constant 0 : index
    %43 = vector.load %arg9[%42, %c0_30, %c0_31] : memref<2x16x16xbf16, #tpu.memory_space<vmem>>, vector<1x16x16xbf16>
    %44 = vector.shape_cast %43 : vector<1x16x16xbf16> to vector<16x16xbf16>
    %45 = vector.shape_cast %37 : vector<16x16xbf16> to vector<1x16x16xbf16>
    tpu.vector_store %arg9[%42, %c0_30, %c0_31], %45 {strides = array<i32>} : memref<2x16x16xbf16, #tpu.memory_space<vmem>>, vector<1x16x16xbf16>,
    %c1_i32_32 = arith.constant 1 : i32
    %c1_i32_33 = arith.constant 1 : i32
    %46 = arith.subi %c1_i32_33, %c1_i32_32 : i32
    %47 = arith.index_cast %c1_i32_32 : i32 to index
    %c0_34 = arith.constant 0 : index
    %c0_35 = arith.constant 0 : index
    %48 = vector.load %arg8[%47, %c0_34, %c0_35] : memref<2x16x16xbf16, #tpu.memory_space<vmem>>, vector<1x16x16xbf16>
    %49 = vector.shape_cast %48 : vector<1x16x16xbf16> to vector<16x16xbf16>
    %50 = arith.extf %49 : vector<16x16xbf16> to vector<16x16xf32>
    %51 = arith.index_cast %46 : i32 to index
    %c0_36 = arith.constant 0 : index
    %c0_37 = arith.constant 0 : index
    %52 = vector.load %arg9[%51, %c0_36, %c0_37] : memref<2x16x16xbf16, #tpu.memory_space<vmem>>, vector<1x16x16xbf16>
    %53 = vector.shape_cast %52 : vector<1x16x16xbf16> to vector<16x16xbf16>
    %54 = arith.extf %53 : vector<16x16xbf16> to vector<16x16xf32>
    %cst_38 = arith.constant dense<0.000000e+00> : vector<16x16xf32>
    %55 = tpu.matmul %33, %2, %cst_38 {dimension_numbers = #tpu.dot_dimension_numbers<[1], [0], [0], [1], [0, 0, 1, 1], [], []>} : vector<16x16xbf16>, vector<16x16xbf16>, vector<16x16xf32> -> vector<16x16xf32>
    %56 = arith.addf %50, %55 : vector<16x16xf32>
    %57 = math.tanh %56 : vector<16x16xf32>
    %58 = arith.truncf %57 : vector<16x16xf32> to vector<16x16xbf16>
    %cst_39 = arith.constant dense<0.000000e+00> : vector<16x16xf32>
    %59 = tpu.matmul %37, %3, %cst_39 {dimension_numbers = #tpu.dot_dimension_numbers<[1], [0], [0], [1], [0, 0, 1, 1], [], []>} : vector<16x16xbf16>, vector<16x16xbf16>, vector<16x16xf32> -> vector<16x16xf32>
    %60 = arith.addf %54, %59 : vector<16x16xf32>
    %61 = math.tanh %60 : vector<16x16xf32>
    %62 = arith.truncf %61 : vector<16x16xf32> to vector<16x16xbf16>
    %63 = arith.index_cast %c1_i32_32 : i32 to index
    %c0_40 = arith.constant 0 : index
    %c0_41 = arith.constant 0 : index
    %64 = vector.load %arg8[%63, %c0_40, %c0_41] : memref<2x16x16xbf16, #tpu.memory_space<vmem>>, vector<1x16x16xbf16>
    %65 = vector.shape_cast %64 : vector<1x16x16xbf16> to vector<16x16xbf16>
    %66 = vector.shape_cast %58 : vector<16x16xbf16> to vector<1x16x16xbf16>
    tpu.vector_store %arg8[%63, %c0_40, %c0_41], %66 {strides = array<i32>} : memref<2x16x16xbf16, #tpu.memory_space<vmem>>, vector<1x16x16xbf16>,
    %67 = arith.index_cast %46 : i32 to index
    %c0_42 = arith.constant 0 : index
    %c0_43 = arith.constant 0 : index
    %68 = vector.load %arg9[%67, %c0_42, %c0_43] : memref<2x16x16xbf16, #tpu.memory_space<vmem>>, vector<1x16x16xbf16>
    %69 = vector.shape_cast %68 : vector<1x16x16xbf16> to vector<16x16xbf16>
    %70 = vector.shape_cast %62 : vector<16x16xbf16> to vector<1x16x16xbf16>
    tpu.vector_store %arg9[%67, %c0_42, %c0_43], %70 {strides = array<i32>} : memref<2x16x16xbf16, #tpu.memory_space<vmem>>, vector<1x16x16xbf16>,
    %c2_i32 = arith.constant 2 : i32
    return
  }
  func.func @transform_0(%arg0: i32) -> (i32, i32, i32) {
    %c0_i32 = arith.constant 0 : i32
    %c0_i32_0 = arith.constant 0 : i32
    %c0_i32_1 = arith.constant 0 : i32
    return %c0_i32, %arg0, %c0_i32_0 : i32, i32, i32
  }
  func.func @transform_1(%arg0: i32) -> (i32, i32) {
    %c0_i32 = arith.constant 0 : i32
    %c0_i32_0 = arith.constant 0 : i32
    %c0_i32_1 = arith.constant 0 : i32
    return %c0_i32, %c0_i32_0 : i32, i32
  }
  func.func @transform_2(%arg0: i32) -> (i32, i32) {
    %c0_i32 = arith.constant 0 : i32
    %c0_i32_0 = arith.constant 0 : i32
    %c0_i32_1 = arith.constant 0 : i32
    return %c0_i32, %c0_i32_0 : i32, i32
  }
  func.func @transform_3(%arg0: i32) -> (i32, i32) {
    %c0_i32 = arith.constant 0 : i32
    %c0_i32_0 = arith.constant 0 : i32
    %c0_i32_1 = arith.constant 0 : i32
    return %c0_i32, %c0_i32_0 : i32, i32
  }
  func.func @transform_4(%arg0: i32) -> (i32, i32) {
    %c0_i32 = arith.constant 0 : i32
    %c0_i32_0 = arith.constant 0 : i32
    %c0_i32_1 = arith.constant 0 : i32
    return %c0_i32, %c0_i32_0 : i32, i32
  }
  func.func @transform_5(%arg0: i32) -> (i32, i32) {
    %c0_i32 = arith.constant 0 : i32
    %c0_i32_0 = arith.constant 0 : i32
    %c0_i32_1 = arith.constant 0 : i32
    return %c0_i32, %c0_i32_0 : i32, i32
  }
  func.func @transform_6(%arg0: i32) -> (i32, i32) {
    %c0_i32 = arith.constant 0 : i32
    %c0_i32_0 = arith.constant 0 : i32
    %c0_i32_1 = arith.constant 0 : i32
    return %c0_i32, %c0_i32_0 : i32, i32
  }
  func.func @transform_7(%arg0: i32) -> (i32, i32, i32) {
    %c0_i32 = arith.constant 0 : i32
    %c0_i32_0 = arith.constant 0 : i32
    %c0_i32_1 = arith.constant 0 : i32
    return %c0_i32, %arg0, %c0_i32_0 : i32, i32, i32
  }
  func.func @transform_8(%arg0: i32) -> (i32, i32, i32) {
    %c0_i32 = arith.constant 0 : i32
    %c0_i32_0 = arith.constant 0 : i32
    %c0_i32_1 = arith.constant 0 : i32
    return %c0_i32, %arg0, %c0_i32_0 : i32, i32, i32
  }
}

module attributes {stable_mosaic.version = 11 : i64} {
  func.func @kernel(%arg0: i32, %arg1: memref<8x16x32xbf16, #tpu.memory_space<vmem>>, %arg2: memref<32x16xbf16, #tpu.memory_space<vmem>>, %arg3: memref<32x16xbf16, #tpu.memory_space<vmem>>, %arg4: memref<16x16xbf16, #tpu.memory_space<vmem>>, %arg5: memref<16x16xbf16, #tpu.memory_space<vmem>>, %arg6: memref<1x16xf32, #tpu.memory_space<vmem>>, %arg7: memref<1x16xf32, #tpu.memory_space<vmem>>, %arg8: memref<8x16x16xbf16, #tpu.memory_space<vmem>>, %arg9: memref<8x16x16xbf16, #tpu.memory_space<vmem>>) attributes {dimension_semantics = [#tpu.dimension_semantics<parallel>], iteration_bounds = array<i64: 1>, scalar_prefetch = 0 : i64, scratch_operands = 0 : i64, tpu.core_type = #tpu.core_type<tc>, window_params = [{transform_indices = @transform_0, window_bounds = array<i64: 8, 16, 32>}, {pipeline_mode = #tpu.pipeline_mode<synchronous>, transform_indices = @transform_1, window_bounds = array<i64: 32, 16>}, {pipeline_mode = #tpu.pipeline_mode<synchronous>, transform_indices = @transform_2, window_bounds = array<i64: 32, 16>}, {pipeline_mode = #tpu.pipeline_mode<synchronous>, transform_indices = @transform_3, window_bounds = array<i64: 16, 16>}, {pipeline_mode = #tpu.pipeline_mode<synchronous>, transform_indices = @transform_4, window_bounds = array<i64: 16, 16>}, {pipeline_mode = #tpu.pipeline_mode<synchronous>, transform_indices = @transform_5, window_bounds = array<i64: 1, 16>}, {pipeline_mode = #tpu.pipeline_mode<synchronous>, transform_indices = @transform_6, window_bounds = array<i64: 1, 16>}, {transform_indices = @transform_7, window_bounds = array<i64: 8, 16, 16>}, {transform_indices = @transform_8, window_bounds = array<i64: 8, 16, 16>}]} {
    %c0 = arith.constant 0 : index
    %c0_0 = arith.constant 0 : index
    %0 = vector.load %arg2[%c0, %c0_0] : memref<32x16xbf16, #tpu.memory_space<vmem>>, vector<32x16xbf16>
    %c0_1 = arith.constant 0 : index
    %c0_2 = arith.constant 0 : index
    %1 = vector.load %arg3[%c0_1, %c0_2] : memref<32x16xbf16, #tpu.memory_space<vmem>>, vector<32x16xbf16>
    %c0_3 = arith.constant 0 : index
    %c0_4 = arith.constant 0 : index
    %2 = vector.load %arg4[%c0_3, %c0_4] : memref<16x16xbf16, #tpu.memory_space<vmem>>, vector<16x16xbf16>
    %c0_5 = arith.constant 0 : index
    %c0_6 = arith.constant 0 : index
    %3 = vector.load %arg5[%c0_5, %c0_6] : memref<16x16xbf16, #tpu.memory_space<vmem>>, vector<16x16xbf16>
    %c0_7 = arith.constant 0 : index
    %c0_8 = arith.constant 0 : index
    %c0_9 = arith.constant 0 : index
    %4 = vector.load %arg1[%c0_7, %c0_8, %c0_9] : memref<8x16x32xbf16, #tpu.memory_space<vmem>>, vector<8x16x32xbf16>
    %5 = vector.shape_cast %4 : vector<8x16x32xbf16> to vector<128x32xbf16>
    %cst = arith.constant dense<0.000000e+00> : vector<128x16xf32>
    %6 = tpu.matmul %5, %0, %cst {dimension_numbers = #tpu.dot_dimension_numbers<[1], [0], [0], [1], [0, 0, 1, 1], [], []>} : vector<128x32xbf16>, vector<32x16xbf16>, vector<128x16xf32> -> vector<128x16xf32>
    %c0_10 = arith.constant 0 : index
    %c0_11 = arith.constant 0 : index
    %7 = vector.load %arg6[%c0_10, %c0_11] : memref<1x16xf32, #tpu.memory_space<vmem>>, vector<1x16xf32>
    %8 = vector.broadcast %7 : vector<1x16xf32> to vector<128x16xf32>
    %9 = arith.addf %6, %8 : vector<128x16xf32>
    %10 = vector.shape_cast %9 : vector<128x16xf32> to vector<8x16x16xf32>
    %11 = arith.truncf %10 : vector<8x16x16xf32> to vector<8x16x16xbf16>
    %c0_12 = arith.constant 0 : index
    %c0_13 = arith.constant 0 : index
    %c0_14 = arith.constant 0 : index
    %12 = vector.load %arg8[%c0_12, %c0_13, %c0_14] : memref<8x16x16xbf16, #tpu.memory_space<vmem>>, vector<8x16x16xbf16>
    tpu.vector_store %arg8[%c0_12, %c0_13, %c0_14], %11 {strides = array<i32>} : memref<8x16x16xbf16, #tpu.memory_space<vmem>>, vector<8x16x16xbf16>,
    %cst_15 = arith.constant dense<0.000000e+00> : vector<128x16xf32>
    %13 = tpu.matmul %5, %1, %cst_15 {dimension_numbers = #tpu.dot_dimension_numbers<[1], [0], [0], [1], [0, 0, 1, 1], [], []>} : vector<128x32xbf16>, vector<32x16xbf16>, vector<128x16xf32> -> vector<128x16xf32>
    %c0_16 = arith.constant 0 : index
    %c0_17 = arith.constant 0 : index
    %14 = vector.load %arg7[%c0_16, %c0_17] : memref<1x16xf32, #tpu.memory_space<vmem>>, vector<1x16xf32>
    %15 = vector.broadcast %14 : vector<1x16xf32> to vector<128x16xf32>
    %16 = arith.addf %13, %15 : vector<128x16xf32>
    %17 = vector.shape_cast %16 : vector<128x16xf32> to vector<8x16x16xf32>
    %18 = arith.truncf %17 : vector<8x16x16xf32> to vector<8x16x16xbf16>
    %c0_18 = arith.constant 0 : index
    %c0_19 = arith.constant 0 : index
    %c0_20 = arith.constant 0 : index
    %19 = vector.load %arg9[%c0_18, %c0_19, %c0_20] : memref<8x16x16xbf16, #tpu.memory_space<vmem>>, vector<8x16x16xbf16>
    tpu.vector_store %arg9[%c0_18, %c0_19, %c0_20], %18 {strides = array<i32>} : memref<8x16x16xbf16, #tpu.memory_space<vmem>>, vector<8x16x16xbf16>,
    %cst_21 = arith.constant 0.000000e+00 : bf16
    %20 = vector.broadcast %cst_21 : bf16 to vector<16x16xbf16>
    %c0_i32 = arith.constant 0 : i32
    %c7_i32 = arith.constant 7 : i32
    %21 = arith.subi %c7_i32, %c0_i32 : i32
    %22 = arith.index_cast %c0_i32 : i32 to index
    %c0_22 = arith.constant 0 : index
    %c0_23 = arith.constant 0 : index
    %23 = vector.load %arg8[%22, %c0_22, %c0_23] : memref<8x16x16xbf16, #tpu.memory_space<vmem>>, vector<1x16x16xbf16>
    %24 = vector.shape_cast %23 : vector<1x16x16xbf16> to vector<16x16xbf16>
    %25 = arith.extf %24 : vector<16x16xbf16> to vector<16x16xf32>
    %26 = arith.index_cast %21 : i32 to index
    %c0_24 = arith.constant 0 : index
    %c0_25 = arith.constant 0 : index
    %27 = vector.load %arg9[%26, %c0_24, %c0_25] : memref<8x16x16xbf16, #tpu.memory_space<vmem>>, vector<1x16x16xbf16>
    %28 = vector.shape_cast %27 : vector<1x16x16xbf16> to vector<16x16xbf16>
    %29 = arith.extf %28 : vector<16x16xbf16> to vector<16x16xf32>
    %cst_26 = arith.constant dense<0.000000e+00> : vector<16x16xf32>
    %30 = tpu.matmul %20, %2, %cst_26 {dimension_numbers = #tpu.dot_dimension_numbers<[1], [0], [0], [1], [0, 0, 1, 1], [], []>} : vector<16x16xbf16>, vector<16x16xbf16>, vector<16x16xf32> -> vector<16x16xf32>
    %31 = arith.addf %25, %30 : vector<16x16xf32>
    %32 = math.tanh %31 : vector<16x16xf32>
    %33 = arith.truncf %32 : vector<16x16xf32> to vector<16x16xbf16>
    %cst_27 = arith.constant dense<0.000000e+00> : vector<16x16xf32>
    %34 = tpu.matmul %20, %3, %cst_27 {dimension_numbers = #tpu.dot_dimension_numbers<[1], [0], [0], [1], [0, 0, 1, 1], [], []>} : vector<16x16xbf16>, vector<16x16xbf16>, vector<16x16xf32> -> vector<16x16xf32>
    %35 = arith.addf %29, %34 : vector<16x16xf32>
    %36 = math.tanh %35 : vector<16x16xf32>
    %37 = arith.truncf %36 : vector<16x16xf32> to vector<16x16xbf16>
    %38 = arith.index_cast %c0_i32 : i32 to index
    %c0_28 = arith.constant 0 : index
    %c0_29 = arith.constant 0 : index
    %39 = vector.load %arg8[%38, %c0_28, %c0_29] : memref<8x16x16xbf16, #tpu.memory_space<vmem>>, vector<1x16x16xbf16>
    %40 = vector.shape_cast %39 : vector<1x16x16xbf16> to vector<16x16xbf16>
    %41 = vector.shape_cast %33 : vector<16x16xbf16> to vector<1x16x16xbf16>
    tpu.vector_store %arg8[%38, %c0_28, %c0_29], %41 {strides = array<i32>} : memref<8x16x16xbf16, #tpu.memory_space<vmem>>, vector<1x16x16xbf16>,
    %42 = arith.index_cast %21 : i32 to index
    %c0_30 = arith.constant 0 : index
    %c0_31 = arith.constant 0 : index
    %43 = vector.load %arg9[%42, %c0_30, %c0_31] : memref<8x16x16xbf16, #tpu.memory_space<vmem>>, vector<1x16x16xbf16>
    %44 = vector.shape_cast %43 : vector<1x16x16xbf16> to vector<16x16xbf16>
    %45 = vector.shape_cast %37 : vector<16x16xbf16> to vector<1x16x16xbf16>
    tpu.vector_store %arg9[%42, %c0_30, %c0_31], %45 {strides = array<i32>} : memref<8x16x16xbf16, #tpu.memory_space<vmem>>, vector<1x16x16xbf16>,
    %c1_i32 = arith.constant 1 : i32
    %c7_i32_32 = arith.constant 7 : i32
    %46 = arith.subi %c7_i32_32, %c1_i32 : i32
    %47 = arith.index_cast %c1_i32 : i32 to index
    %c0_33 = arith.constant 0 : index
    %c0_34 = arith.constant 0 : index
    %48 = vector.load %arg8[%47, %c0_33, %c0_34] : memref<8x16x16xbf16, #tpu.memory_space<vmem>>, vector<1x16x16xbf16>
    %49 = vector.shape_cast %48 : vector<1x16x16xbf16> to vector<16x16xbf16>
    %50 = arith.extf %49 : vector<16x16xbf16> to vector<16x16xf32>
    %51 = arith.index_cast %46 : i32 to index
    %c0_35 = arith.constant 0 : index
    %c0_36 = arith.constant 0 : index
    %52 = vector.load %arg9[%51, %c0_35, %c0_36] : memref<8x16x16xbf16, #tpu.memory_space<vmem>>, vector<1x16x16xbf16>
    %53 = vector.shape_cast %52 : vector<1x16x16xbf16> to vector<16x16xbf16>
    %54 = arith.extf %53 : vector<16x16xbf16> to vector<16x16xf32>
    %cst_37 = arith.constant dense<0.000000e+00> : vector<16x16xf32>
    %55 = tpu.matmul %33, %2, %cst_37 {dimension_numbers = #tpu.dot_dimension_numbers<[1], [0], [0], [1], [0, 0, 1, 1], [], []>} : vector<16x16xbf16>, vector<16x16xbf16>, vector<16x16xf32> -> vector<16x16xf32>
    %56 = arith.addf %50, %55 : vector<16x16xf32>
    %57 = math.tanh %56 : vector<16x16xf32>
    %58 = arith.truncf %57 : vector<16x16xf32> to vector<16x16xbf16>
    %cst_38 = arith.constant dense<0.000000e+00> : vector<16x16xf32>
    %59 = tpu.matmul %37, %3, %cst_38 {dimension_numbers = #tpu.dot_dimension_numbers<[1], [0], [0], [1], [0, 0, 1, 1], [], []>} : vector<16x16xbf16>, vector<16x16xbf16>, vector<16x16xf32> -> vector<16x16xf32>
    %60 = arith.addf %54, %59 : vector<16x16xf32>
    %61 = math.tanh %60 : vector<16x16xf32>
    %62 = arith.truncf %61 : vector<16x16xf32> to vector<16x16xbf16>
    %63 = arith.index_cast %c1_i32 : i32 to index
    %c0_39 = arith.constant 0 : index
    %c0_40 = arith.constant 0 : index
    %64 = vector.load %arg8[%63, %c0_39, %c0_40] : memref<8x16x16xbf16, #tpu.memory_space<vmem>>, vector<1x16x16xbf16>
    %65 = vector.shape_cast %64 : vector<1x16x16xbf16> to vector<16x16xbf16>
    %66 = vector.shape_cast %58 : vector<16x16xbf16> to vector<1x16x16xbf16>
    tpu.vector_store %arg8[%63, %c0_39, %c0_40], %66 {strides = array<i32>} : memref<8x16x16xbf16, #tpu.memory_space<vmem>>, vector<1x16x16xbf16>,
    %67 = arith.index_cast %46 : i32 to index
    %c0_41 = arith.constant 0 : index
    %c0_42 = arith.constant 0 : index
    %68 = vector.load %arg9[%67, %c0_41, %c0_42] : memref<8x16x16xbf16, #tpu.memory_space<vmem>>, vector<1x16x16xbf16>
    %69 = vector.shape_cast %68 : vector<1x16x16xbf16> to vector<16x16xbf16>
    %70 = vector.shape_cast %62 : vector<16x16xbf16> to vector<1x16x16xbf16>
    tpu.vector_store %arg9[%67, %c0_41, %c0_42], %70 {strides = array<i32>} : memref<8x16x16xbf16, #tpu.memory_space<vmem>>, vector<1x16x16xbf16>,
    %c2_i32 = arith.constant 2 : i32
    %c7_i32_43 = arith.constant 7 : i32
    %71 = arith.subi %c7_i32_43, %c2_i32 : i32
    %72 = arith.index_cast %c2_i32 : i32 to index
    %c0_44 = arith.constant 0 : index
    %c0_45 = arith.constant 0 : index
    %73 = vector.load %arg8[%72, %c0_44, %c0_45] : memref<8x16x16xbf16, #tpu.memory_space<vmem>>, vector<1x16x16xbf16>
    %74 = vector.shape_cast %73 : vector<1x16x16xbf16> to vector<16x16xbf16>
    %75 = arith.extf %74 : vector<16x16xbf16> to vector<16x16xf32>
    %76 = arith.index_cast %71 : i32 to index
    %c0_46 = arith.constant 0 : index
    %c0_47 = arith.constant 0 : index
    %77 = vector.load %arg9[%76, %c0_46, %c0_47] : memref<8x16x16xbf16, #tpu.memory_space<vmem>>, vector<1x16x16xbf16>
    %78 = vector.shape_cast %77 : vector<1x16x16xbf16> to vector<16x16xbf16>
    %79 = arith.extf %78 : vector<16x16xbf16> to vector<16x16xf32>
    %cst_48 = arith.constant dense<0.000000e+00> : vector<16x16xf32>
    %80 = tpu.matmul %58, %2, %cst_48 {dimension_numbers = #tpu.dot_dimension_numbers<[1], [0], [0], [1], [0, 0, 1, 1], [], []>} : vector<16x16xbf16>, vector<16x16xbf16>, vector<16x16xf32> -> vector<16x16xf32>
    %81 = arith.addf %75, %80 : vector<16x16xf32>
    %82 = math.tanh %81 : vector<16x16xf32>
    %83 = arith.truncf %82 : vector<16x16xf32> to vector<16x16xbf16>
    %cst_49 = arith.constant dense<0.000000e+00> : vector<16x16xf32>
    %84 = tpu.matmul %62, %3, %cst_49 {dimension_numbers = #tpu.dot_dimension_numbers<[1], [0], [0], [1], [0, 0, 1, 1], [], []>} : vector<16x16xbf16>, vector<16x16xbf16>, vector<16x16xf32> -> vector<16x16xf32>
    %85 = arith.addf %79, %84 : vector<16x16xf32>
    %86 = math.tanh %85 : vector<16x16xf32>
    %87 = arith.truncf %86 : vector<16x16xf32> to vector<16x16xbf16>
    %88 = arith.index_cast %c2_i32 : i32 to index
    %c0_50 = arith.constant 0 : index
    %c0_51 = arith.constant 0 : index
    %89 = vector.load %arg8[%88, %c0_50, %c0_51] : memref<8x16x16xbf16, #tpu.memory_space<vmem>>, vector<1x16x16xbf16>
    %90 = vector.shape_cast %89 : vector<1x16x16xbf16> to vector<16x16xbf16>
    %91 = vector.shape_cast %83 : vector<16x16xbf16> to vector<1x16x16xbf16>
    tpu.vector_store %arg8[%88, %c0_50, %c0_51], %91 {strides = array<i32>} : memref<8x16x16xbf16, #tpu.memory_space<vmem>>, vector<1x16x16xbf16>,
    %92 = arith.index_cast %71 : i32 to index
    %c0_52 = arith.constant 0 : index
    %c0_53 = arith.constant 0 : index
    %93 = vector.load %arg9[%92, %c0_52, %c0_53] : memref<8x16x16xbf16, #tpu.memory_space<vmem>>, vector<1x16x16xbf16>
    %94 = vector.shape_cast %93 : vector<1x16x16xbf16> to vector<16x16xbf16>
    %95 = vector.shape_cast %87 : vector<16x16xbf16> to vector<1x16x16xbf16>
    tpu.vector_store %arg9[%92, %c0_52, %c0_53], %95 {strides = array<i32>} : memref<8x16x16xbf16, #tpu.memory_space<vmem>>, vector<1x16x16xbf16>,
    %c3_i32 = arith.constant 3 : i32
    %c7_i32_54 = arith.constant 7 : i32
    %96 = arith.subi %c7_i32_54, %c3_i32 : i32
    %97 = arith.index_cast %c3_i32 : i32 to index
    %c0_55 = arith.constant 0 : index
    %c0_56 = arith.constant 0 : index
    %98 = vector.load %arg8[%97, %c0_55, %c0_56] : memref<8x16x16xbf16, #tpu.memory_space<vmem>>, vector<1x16x16xbf16>
    %99 = vector.shape_cast %98 : vector<1x16x16xbf16> to vector<16x16xbf16>
    %100 = arith.extf %99 : vector<16x16xbf16> to vector<16x16xf32>
    %101 = arith.index_cast %96 : i32 to index
    %c0_57 = arith.constant 0 : index
    %c0_58 = arith.constant 0 : index
    %102 = vector.load %arg9[%101, %c0_57, %c0_58] : memref<8x16x16xbf16, #tpu.memory_space<vmem>>, vector<1x16x16xbf16>
    %103 = vector.shape_cast %102 : vector<1x16x16xbf16> to vector<16x16xbf16>
    %104 = arith.extf %103 : vector<16x16xbf16> to vector<16x16xf32>
    %cst_59 = arith.constant dense<0.000000e+00> : vector<16x16xf32>
    %105 = tpu.matmul %83, %2, %cst_59 {dimension_numbers = #tpu.dot_dimension_numbers<[1], [0], [0], [1], [0, 0, 1, 1], [], []>} : vector<16x16xbf16>, vector<16x16xbf16>, vector<16x16xf32> -> vector<16x16xf32>
    %106 = arith.addf %100, %105 : vector<16x16xf32>
    %107 = math.tanh %106 : vector<16x16xf32>
    %108 = arith.truncf %107 : vector<16x16xf32> to vector<16x16xbf16>
    %cst_60 = arith.constant dense<0.000000e+00> : vector<16x16xf32>
    %109 = tpu.matmul %87, %3, %cst_60 {dimension_numbers = #tpu.dot_dimension_numbers<[1], [0], [0], [1], [0, 0, 1, 1], [], []>} : vector<16x16xbf16>, vector<16x16xbf16>, vector<16x16xf32> -> vector<16x16xf32>
    %110 = arith.addf %104, %109 : vector<16x16xf32>
    %111 = math.tanh %110 : vector<16x16xf32>
    %112 = arith.truncf %111 : vector<16x16xf32> to vector<16x16xbf16>
    %113 = arith.index_cast %c3_i32 : i32 to index
    %c0_61 = arith.constant 0 : index
    %c0_62 = arith.constant 0 : index
    %114 = vector.load %arg8[%113, %c0_61, %c0_62] : memref<8x16x16xbf16, #tpu.memory_space<vmem>>, vector<1x16x16xbf16>
    %115 = vector.shape_cast %114 : vector<1x16x16xbf16> to vector<16x16xbf16>
    %116 = vector.shape_cast %108 : vector<16x16xbf16> to vector<1x16x16xbf16>
    tpu.vector_store %arg8[%113, %c0_61, %c0_62], %116 {strides = array<i32>} : memref<8x16x16xbf16, #tpu.memory_space<vmem>>, vector<1x16x16xbf16>,
    %117 = arith.index_cast %96 : i32 to index
    %c0_63 = arith.constant 0 : index
    %c0_64 = arith.constant 0 : index
    %118 = vector.load %arg9[%117, %c0_63, %c0_64] : memref<8x16x16xbf16, #tpu.memory_space<vmem>>, vector<1x16x16xbf16>
    %119 = vector.shape_cast %118 : vector<1x16x16xbf16> to vector<16x16xbf16>
    %120 = vector.shape_cast %112 : vector<16x16xbf16> to vector<1x16x16xbf16>
    tpu.vector_store %arg9[%117, %c0_63, %c0_64], %120 {strides = array<i32>} : memref<8x16x16xbf16, #tpu.memory_space<vmem>>, vector<1x16x16xbf16>,
    %c4_i32 = arith.constant 4 : i32
    %c7_i32_65 = arith.constant 7 : i32
    %121 = arith.subi %c7_i32_65, %c4_i32 : i32
    %122 = arith.index_cast %c4_i32 : i32 to index
    %c0_66 = arith.constant 0 : index
    %c0_67 = arith.constant 0 : index
    %123 = vector.load %arg8[%122, %c0_66, %c0_67] : memref<8x16x16xbf16, #tpu.memory_space<vmem>>, vector<1x16x16xbf16>
    %124 = vector.shape_cast %123 : vector<1x16x16xbf16> to vector<16x16xbf16>
    %125 = arith.extf %124 : vector<16x16xbf16> to vector<16x16xf32>
    %126 = arith.index_cast %121 : i32 to index
    %c0_68 = arith.constant 0 : index
    %c0_69 = arith.constant 0 : index
    %127 = vector.load %arg9[%126, %c0_68, %c0_69] : memref<8x16x16xbf16, #tpu.memory_space<vmem>>, vector<1x16x16xbf16>
    %128 = vector.shape_cast %127 : vector<1x16x16xbf16> to vector<16x16xbf16>
    %129 = arith.extf %128 : vector<16x16xbf16> to vector<16x16xf32>
    %cst_70 = arith.constant dense<0.000000e+00> : vector<16x16xf32>
    %130 = tpu.matmul %108, %2, %cst_70 {dimension_numbers = #tpu.dot_dimension_numbers<[1], [0], [0], [1], [0, 0, 1, 1], [], []>} : vector<16x16xbf16>, vector<16x16xbf16>, vector<16x16xf32> -> vector<16x16xf32>
    %131 = arith.addf %125, %130 : vector<16x16xf32>
    %132 = math.tanh %131 : vector<16x16xf32>
    %133 = arith.truncf %132 : vector<16x16xf32> to vector<16x16xbf16>
    %cst_71 = arith.constant dense<0.000000e+00> : vector<16x16xf32>
    %134 = tpu.matmul %112, %3, %cst_71 {dimension_numbers = #tpu.dot_dimension_numbers<[1], [0], [0], [1], [0, 0, 1, 1], [], []>} : vector<16x16xbf16>, vector<16x16xbf16>, vector<16x16xf32> -> vector<16x16xf32>
    %135 = arith.addf %129, %134 : vector<16x16xf32>
    %136 = math.tanh %135 : vector<16x16xf32>
    %137 = arith.truncf %136 : vector<16x16xf32> to vector<16x16xbf16>
    %138 = arith.index_cast %c4_i32 : i32 to index
    %c0_72 = arith.constant 0 : index
    %c0_73 = arith.constant 0 : index
    %139 = vector.load %arg8[%138, %c0_72, %c0_73] : memref<8x16x16xbf16, #tpu.memory_space<vmem>>, vector<1x16x16xbf16>
    %140 = vector.shape_cast %139 : vector<1x16x16xbf16> to vector<16x16xbf16>
    %141 = vector.shape_cast %133 : vector<16x16xbf16> to vector<1x16x16xbf16>
    tpu.vector_store %arg8[%138, %c0_72, %c0_73], %141 {strides = array<i32>} : memref<8x16x16xbf16, #tpu.memory_space<vmem>>, vector<1x16x16xbf16>,
    %142 = arith.index_cast %121 : i32 to index
    %c0_74 = arith.constant 0 : index
    %c0_75 = arith.constant 0 : index
    %143 = vector.load %arg9[%142, %c0_74, %c0_75] : memref<8x16x16xbf16, #tpu.memory_space<vmem>>, vector<1x16x16xbf16>
    %144 = vector.shape_cast %143 : vector<1x16x16xbf16> to vector<16x16xbf16>
    %145 = vector.shape_cast %137 : vector<16x16xbf16> to vector<1x16x16xbf16>
    tpu.vector_store %arg9[%142, %c0_74, %c0_75], %145 {strides = array<i32>} : memref<8x16x16xbf16, #tpu.memory_space<vmem>>, vector<1x16x16xbf16>,
    %c5_i32 = arith.constant 5 : i32
    %c7_i32_76 = arith.constant 7 : i32
    %146 = arith.subi %c7_i32_76, %c5_i32 : i32
    %147 = arith.index_cast %c5_i32 : i32 to index
    %c0_77 = arith.constant 0 : index
    %c0_78 = arith.constant 0 : index
    %148 = vector.load %arg8[%147, %c0_77, %c0_78] : memref<8x16x16xbf16, #tpu.memory_space<vmem>>, vector<1x16x16xbf16>
    %149 = vector.shape_cast %148 : vector<1x16x16xbf16> to vector<16x16xbf16>
    %150 = arith.extf %149 : vector<16x16xbf16> to vector<16x16xf32>
    %151 = arith.index_cast %146 : i32 to index
    %c0_79 = arith.constant 0 : index
    %c0_80 = arith.constant 0 : index
    %152 = vector.load %arg9[%151, %c0_79, %c0_80] : memref<8x16x16xbf16, #tpu.memory_space<vmem>>, vector<1x16x16xbf16>
    %153 = vector.shape_cast %152 : vector<1x16x16xbf16> to vector<16x16xbf16>
    %154 = arith.extf %153 : vector<16x16xbf16> to vector<16x16xf32>
    %cst_81 = arith.constant dense<0.000000e+00> : vector<16x16xf32>
    %155 = tpu.matmul %133, %2, %cst_81 {dimension_numbers = #tpu.dot_dimension_numbers<[1], [0], [0], [1], [0, 0, 1, 1], [], []>} : vector<16x16xbf16>, vector<16x16xbf16>, vector<16x16xf32> -> vector<16x16xf32>
    %156 = arith.addf %150, %155 : vector<16x16xf32>
    %157 = math.tanh %156 : vector<16x16xf32>
    %158 = arith.truncf %157 : vector<16x16xf32> to vector<16x16xbf16>
    %cst_82 = arith.constant dense<0.000000e+00> : vector<16x16xf32>
    %159 = tpu.matmul %137, %3, %cst_82 {dimension_numbers = #tpu.dot_dimension_numbers<[1], [0], [0], [1], [0, 0, 1, 1], [], []>} : vector<16x16xbf16>, vector<16x16xbf16>, vector<16x16xf32> -> vector<16x16xf32>
    %160 = arith.addf %154, %159 : vector<16x16xf32>
    %161 = math.tanh %160 : vector<16x16xf32>
    %162 = arith.truncf %161 : vector<16x16xf32> to vector<16x16xbf16>
    %163 = arith.index_cast %c5_i32 : i32 to index
    %c0_83 = arith.constant 0 : index
    %c0_84 = arith.constant 0 : index
    %164 = vector.load %arg8[%163, %c0_83, %c0_84] : memref<8x16x16xbf16, #tpu.memory_space<vmem>>, vector<1x16x16xbf16>
    %165 = vector.shape_cast %164 : vector<1x16x16xbf16> to vector<16x16xbf16>
    %166 = vector.shape_cast %158 : vector<16x16xbf16> to vector<1x16x16xbf16>
    tpu.vector_store %arg8[%163, %c0_83, %c0_84], %166 {strides = array<i32>} : memref<8x16x16xbf16, #tpu.memory_space<vmem>>, vector<1x16x16xbf16>,
    %167 = arith.index_cast %146 : i32 to index
    %c0_85 = arith.constant 0 : index
    %c0_86 = arith.constant 0 : index
    %168 = vector.load %arg9[%167, %c0_85, %c0_86] : memref<8x16x16xbf16, #tpu.memory_space<vmem>>, vector<1x16x16xbf16>
    %169 = vector.shape_cast %168 : vector<1x16x16xbf16> to vector<16x16xbf16>
    %170 = vector.shape_cast %162 : vector<16x16xbf16> to vector<1x16x16xbf16>
    tpu.vector_store %arg9[%167, %c0_85, %c0_86], %170 {strides = array<i32>} : memref<8x16x16xbf16, #tpu.memory_space<vmem>>, vector<1x16x16xbf16>,
    %c6_i32 = arith.constant 6 : i32
    %c7_i32_87 = arith.constant 7 : i32
    %171 = arith.subi %c7_i32_87, %c6_i32 : i32
    %172 = arith.index_cast %c6_i32 : i32 to index
    %c0_88 = arith.constant 0 : index
    %c0_89 = arith.constant 0 : index
    %173 = vector.load %arg8[%172, %c0_88, %c0_89] : memref<8x16x16xbf16, #tpu.memory_space<vmem>>, vector<1x16x16xbf16>
    %174 = vector.shape_cast %173 : vector<1x16x16xbf16> to vector<16x16xbf16>
    %175 = arith.extf %174 : vector<16x16xbf16> to vector<16x16xf32>
    %176 = arith.index_cast %171 : i32 to index
    %c0_90 = arith.constant 0 : index
    %c0_91 = arith.constant 0 : index
    %177 = vector.load %arg9[%176, %c0_90, %c0_91] : memref<8x16x16xbf16, #tpu.memory_space<vmem>>, vector<1x16x16xbf16>
    %178 = vector.shape_cast %177 : vector<1x16x16xbf16> to vector<16x16xbf16>
    %179 = arith.extf %178 : vector<16x16xbf16> to vector<16x16xf32>
    %cst_92 = arith.constant dense<0.000000e+00> : vector<16x16xf32>
    %180 = tpu.matmul %158, %2, %cst_92 {dimension_numbers = #tpu.dot_dimension_numbers<[1], [0], [0], [1], [0, 0, 1, 1], [], []>} : vector<16x16xbf16>, vector<16x16xbf16>, vector<16x16xf32> -> vector<16x16xf32>
    %181 = arith.addf %175, %180 : vector<16x16xf32>
    %182 = math.tanh %181 : vector<16x16xf32>
    %183 = arith.truncf %182 : vector<16x16xf32> to vector<16x16xbf16>
    %cst_93 = arith.constant dense<0.000000e+00> : vector<16x16xf32>
    %184 = tpu.matmul %162, %3, %cst_93 {dimension_numbers = #tpu.dot_dimension_numbers<[1], [0], [0], [1], [0, 0, 1, 1], [], []>} : vector<16x16xbf16>, vector<16x16xbf16>, vector<16x16xf32> -> vector<16x16xf32>
    %185 = arith.addf %179, %184 : vector<16x16xf32>
    %186 = math.tanh %185 : vector<16x16xf32>
    %187 = arith.truncf %186 : vector<16x16xf32> to vector<16x16xbf16>
    %188 = arith.index_cast %c6_i32 : i32 to index
    %c0_94 = arith.constant 0 : index
    %c0_95 = arith.constant 0 : index
    %189 = vector.load %arg8[%188, %c0_94, %c0_95] : memref<8x16x16xbf16, #tpu.memory_space<vmem>>, vector<1x16x16xbf16>
    %190 = vector.shape_cast %189 : vector<1x16x16xbf16> to vector<16x16xbf16>
    %191 = vector.shape_cast %183 : vector<16x16xbf16> to vector<1x16x16xbf16>
    tpu.vector_store %arg8[%188, %c0_94, %c0_95], %191 {strides = array<i32>} : memref<8x16x16xbf16, #tpu.memory_space<vmem>>, vector<1x16x16xbf16>,
    %192 = arith.index_cast %171 : i32 to index
    %c0_96 = arith.constant 0 : index
    %c0_97 = arith.constant 0 : index
    %193 = vector.load %arg9[%192, %c0_96, %c0_97] : memref<8x16x16xbf16, #tpu.memory_space<vmem>>, vector<1x16x16xbf16>
    %194 = vector.shape_cast %193 : vector<1x16x16xbf16> to vector<16x16xbf16>
    %195 = vector.shape_cast %187 : vector<16x16xbf16> to vector<1x16x16xbf16>
    tpu.vector_store %arg9[%192, %c0_96, %c0_97], %195 {strides = array<i32>} : memref<8x16x16xbf16, #tpu.memory_space<vmem>>, vector<1x16x16xbf16>,
    %c7_i32_98 = arith.constant 7 : i32
    %c7_i32_99 = arith.constant 7 : i32
    %196 = arith.subi %c7_i32_99, %c7_i32_98 : i32
    %197 = arith.index_cast %c7_i32_98 : i32 to index
    %c0_100 = arith.constant 0 : index
    %c0_101 = arith.constant 0 : index
    %198 = vector.load %arg8[%197, %c0_100, %c0_101] : memref<8x16x16xbf16, #tpu.memory_space<vmem>>, vector<1x16x16xbf16>
    %199 = vector.shape_cast %198 : vector<1x16x16xbf16> to vector<16x16xbf16>
    %200 = arith.extf %199 : vector<16x16xbf16> to vector<16x16xf32>
    %201 = arith.index_cast %196 : i32 to index
    %c0_102 = arith.constant 0 : index
    %c0_103 = arith.constant 0 : index
    %202 = vector.load %arg9[%201, %c0_102, %c0_103] : memref<8x16x16xbf16, #tpu.memory_space<vmem>>, vector<1x16x16xbf16>
    %203 = vector.shape_cast %202 : vector<1x16x16xbf16> to vector<16x16xbf16>
    %204 = arith.extf %203 : vector<16x16xbf16> to vector<16x16xf32>
    %cst_104 = arith.constant dense<0.000000e+00> : vector<16x16xf32>
    %205 = tpu.matmul %183, %2, %cst_104 {dimension_numbers = #tpu.dot_dimension_numbers<[1], [0], [0], [1], [0, 0, 1, 1], [], []>} : vector<16x16xbf16>, vector<16x16xbf16>, vector<16x16xf32> -> vector<16x16xf32>
    %206 = arith.addf %200, %205 : vector<16x16xf32>
    %207 = math.tanh %206 : vector<16x16xf32>
    %208 = arith.truncf %207 : vector<16x16xf32> to vector<16x16xbf16>
    %cst_105 = arith.constant dense<0.000000e+00> : vector<16x16xf32>
    %209 = tpu.matmul %187, %3, %cst_105 {dimension_numbers = #tpu.dot_dimension_numbers<[1], [0], [0], [1], [0, 0, 1, 1], [], []>} : vector<16x16xbf16>, vector<16x16xbf16>, vector<16x16xf32> -> vector<16x16xf32>
    %210 = arith.addf %204, %209 : vector<16x16xf32>
    %211 = math.tanh %210 : vector<16x16xf32>
    %212 = arith.truncf %211 : vector<16x16xf32> to vector<16x16xbf16>
    %213 = arith.index_cast %c7_i32_98 : i32 to index
    %c0_106 = arith.constant 0 : index
    %c0_107 = arith.constant 0 : index
    %214 = vector.load %arg8[%213, %c0_106, %c0_107] : memref<8x16x16xbf16, #tpu.memory_space<vmem>>, vector<1x16x16xbf16>
    %215 = vector.shape_cast %214 : vector<1x16x16xbf16> to vector<16x16xbf16>
    %216 = vector.shape_cast %208 : vector<16x16xbf16> to vector<1x16x16xbf16>
    tpu.vector_store %arg8[%213, %c0_106, %c0_107], %216 {strides = array<i32>} : memref<8x16x16xbf16, #tpu.memory_space<vmem>>, vector<1x16x16xbf16>,
    %217 = arith.index_cast %196 : i32 to index
    %c0_108 = arith.constant 0 : index
    %c0_109 = arith.constant 0 : index
    %218 = vector.load %arg9[%217, %c0_108, %c0_109] : memref<8x16x16xbf16, #tpu.memory_space<vmem>>, vector<1x16x16xbf16>
    %219 = vector.shape_cast %218 : vector<1x16x16xbf16> to vector<16x16xbf16>
    %220 = vector.shape_cast %212 : vector<16x16xbf16> to vector<1x16x16xbf16>
    tpu.vector_store %arg9[%217, %c0_108, %c0_109], %220 {strides = array<i32>} : memref<8x16x16xbf16, #tpu.memory_space<vmem>>, vector<1x16x16xbf16>,
    %c8_i32 = arith.constant 8 : i32
    return
  }
  func.func @transform_0(%arg0: i32) -> (i32, i32, i32) {
    %c0_i32 = arith.constant 0 : i32
    %c0_i32_0 = arith.constant 0 : i32
    %c0_i32_1 = arith.constant 0 : i32
    return %c0_i32, %arg0, %c0_i32_0 : i32, i32, i32
  }
  func.func @transform_1(%arg0: i32) -> (i32, i32) {
    %c0_i32 = arith.constant 0 : i32
    %c0_i32_0 = arith.constant 0 : i32
    %c0_i32_1 = arith.constant 0 : i32
    return %c0_i32, %c0_i32_0 : i32, i32
  }
  func.func @transform_2(%arg0: i32) -> (i32, i32) {
    %c0_i32 = arith.constant 0 : i32
    %c0_i32_0 = arith.constant 0 : i32
    %c0_i32_1 = arith.constant 0 : i32
    return %c0_i32, %c0_i32_0 : i32, i32
  }
  func.func @transform_3(%arg0: i32) -> (i32, i32) {
    %c0_i32 = arith.constant 0 : i32
    %c0_i32_0 = arith.constant 0 : i32
    %c0_i32_1 = arith.constant 0 : i32
    return %c0_i32, %c0_i32_0 : i32, i32
  }
  func.func @transform_4(%arg0: i32) -> (i32, i32) {
    %c0_i32 = arith.constant 0 : i32
    %c0_i32_0 = arith.constant 0 : i32
    %c0_i32_1 = arith.constant 0 : i32
    return %c0_i32, %c0_i32_0 : i32, i32
  }
  func.func @transform_5(%arg0: i32) -> (i32, i32) {
    %c0_i32 = arith.constant 0 : i32
    %c0_i32_0 = arith.constant 0 : i32
    %c0_i32_1 = arith.constant 0 : i32
    return %c0_i32, %c0_i32_0 : i32, i32
  }
  func.func @transform_6(%arg0: i32) -> (i32, i32) {
    %c0_i32 = arith.constant 0 : i32
    %c0_i32_0 = arith.constant 0 : i32
    %c0_i32_1 = arith.constant 0 : i32
    return %c0_i32, %c0_i32_0 : i32, i32
  }
  func.func @transform_7(%arg0: i32) -> (i32, i32, i32) {
    %c0_i32 = arith.constant 0 : i32
    %c0_i32_0 = arith.constant 0 : i32
    %c0_i32_1 = arith.constant 0 : i32
    return %c0_i32, %arg0, %c0_i32_0 : i32, i32, i32
  }
  func.func @transform_8(%arg0: i32) -> (i32, i32, i32) {
    %c0_i32 = arith.constant 0 : i32
    %c0_i32_0 = arith.constant 0 : i32
    %c0_i32_1 = arith.constant 0 : i32
    return %c0_i32, %arg0, %c0_i32_0 : i32, i32, i32
  }
}

</mosaic_0001>

<llo_original>
// kernel: _lambda_.3
$region0: #{_lambda_.3}
  #allocation0 [shape = 'u32[]', space=smem, size = 0x4, offset = 0x4, fixed_abs, tag = 'smem constant byte address 0x4 - core index']
  #allocation1 [shape = 'u32[72,128]{1,0:T(1,128)}', space=vmem, size = 0x9000, scoped, tag = 'internal scratch']
  %s0 = inlined_call_operand.vmem [shape: bf16[2,16,32], index: 0, kind: input, shape index: {}]
  %s1 = inlined_call_operand.vmem [shape: bf16[32,16], index: 1, kind: input, shape index: {}]
  %s2 = inlined_call_operand.vmem [shape: bf16[32,16], index: 2, kind: input, shape index: {}]
  %s3 = inlined_call_operand.vmem [shape: bf16[16,16], index: 3, kind: input, shape index: {}]
  %s4 = inlined_call_operand.vmem [shape: bf16[16,16], index: 4, kind: input, shape index: {}]
  %s5 = inlined_call_operand.vmem [shape: f32[1,16], index: 5, kind: input, shape index: {}]
  %s6 = inlined_call_operand.vmem [shape: f32[1,16], index: 6, kind: input, shape index: {}]
  %s7 = inlined_call_operand.vmem [shape: bf16[2,16,16], index: 7, kind: output, shape index: {0}]
  %s8 = inlined_call_operand.vmem [shape: bf16[2,16,16], index: 8, kind: output, shape index: {1}]
  %9 = xla_tuple %s7, %s8
  %s10 = sld [smem:[#allocation0]]
  $region46: #{_lambda_.3} parent=0
    _
  %s12 = ssub.s32 1, %s10
  %s13 = scalar_select 0, %s12, %s10
  // Predicated region
  $region2: #{_lambda_.3} parent=0 // pred_check
    _
  $region3: #{_lambda_.3} parent=0 // pred_check_branch
    %15 = sbr.rel (0) target = $region5
  $region4: #{_lambda_.3} parent=0 // pred_region
    _
  $region5: #{_lambda_.3} parent=0 // pred_fallthru
    _
  // Predicated region
  $region6: #{_lambda_.3} parent=0 // pred_check
    _
  $region7: #{_lambda_.3} parent=0 // pred_check_branch
    %17 = sbr.rel (0) target = $region9
  $region8: #{_lambda_.3} parent=0 // pred_region
    _
  $region9: #{_lambda_.3} parent=0 // pred_fallthru
    _
  // Predicated region
  $region10: #{_lambda_.3} parent=0 // pred_check
    _
  $region11: #{_lambda_.3} parent=0 // pred_check_branch
    %19 = sbr.rel (0) target = $region13
  $region12: #{_lambda_.3} parent=0 // pred_region
    _
  $region13: #{_lambda_.3} parent=0 // pred_fallthru
    _
  // Predicated region
  $region14: #{_lambda_.3} parent=0 // pred_check
    _
  $region15: #{_lambda_.3} parent=0 // pred_check_branch
    %21 = sbr.rel (0) target = $region17
  $region16: #{_lambda_.3} parent=0 // pred_region
    _
  $region17: #{_lambda_.3} parent=0 // pred_fallthru
    _
  // Predicated region
  $region18: #{_lambda_.3} parent=0 // pred_check
    _
  $region19: #{_lambda_.3} parent=0 // pred_check_branch
    %23 = sbr.rel (0) target = $region21
  $region20: #{_lambda_.3} parent=0 // pred_region
    _
  $region21: #{_lambda_.3} parent=0 // pred_fallthru
    _
  // Predicated region
  $region22: #{_lambda_.3} parent=0 // pred_check
    _
  $region23: #{_lambda_.3} parent=0 // pred_check_branch
    %25 = sbr.rel (0) target = $region25
  $region24: #{_lambda_.3} parent=0 // pred_region
    _
  $region25: #{_lambda_.3} parent=0 // pred_fallthru
    _
  // Predicated region
  $region26: #{_lambda_.3} parent=0 // pred_check
    _
  $region27: #{_lambda_.3} parent=0 // pred_check_branch
    %27 = sbr.rel (0) target = $region29
  $region28: #{_lambda_.3} parent=0 // pred_region
    _
  $region29: #{_lambda_.3} parent=0 // pred_fallthru
    _
  %v29 = vld [vmem:[%s1] sm:$0xf]
  %v30 = vld [vmem:[%s1 + $0x4] sm:$0xf]
  %v31 = vld [vmem:[%s1 + $0x8] sm:$0xf]
  %v32 = vld [vmem:[%s1 + $0xc] sm:$0xf]
  %v33 = vld [vmem:[%s2] sm:$0xf]
  %v34 = vld [vmem:[%s2 + $0x4] sm:$0xf]
  %v35 = vld [vmem:[%s2 + $0x8] sm:$0xf]
  %v36 = vld [vmem:[%s2 + $0xc] sm:$0xf]
  %v37 = vld [vmem:[%s3] sm:$0xf]
  %v38 = vld [vmem:[%s3 + $0x4] sm:$0xf]
  %v39 = vld [vmem:[%s4] sm:$0xf]
  %v40 = vld [vmem:[%s4 + $0x4] sm:$0xf]
  %v41 = vld [vmem:[%s0] sm:$0xf]
  %v42 = vld [vmem:[%s0 + $0x4] sm:$0xf]
  %v43 = vld [vmem:[%s0 + $0x8] sm:$0xf]
  %v44 = vld [vmem:[%s0 + $0xc] sm:$0xf]
  %v45 = vld [vmem:[%s5] sm:$0x1]
  %v47 = vperm.slane %v45, 0
  %v53 = vunpack.c.l.b16 %v41
  %v54 = vunpack.c.l.b16 %v42
  %v55 = vunpack.c.l.b16 %v43
  %v56 = vunpack.c.l.b16 %v44
  %v57 = vpack.c.b16 %v54, %v53
  %v58 = vpack.c.b16 %v56, %v55
  %v63 = vunpack.c.l.b16 %v29
  %v64 = vunpack.c.l.b16 %v30
  %v65 = vunpack.c.l.b16 %v31
  %v66 = vunpack.c.l.b16 %v32
  %v67 = vpack.c.b16 %v64, %v63
  %v68 = vpack.c.b16 %v66, %v65
  %vm71 = vcmask 261120
  %v73 = vsel %vm71, %v57, 0
  %v76 = vsel %vm71, %v58, 0
  %78 = vmatpush.bf16.msra.mxu0 0
  %79 = vmatpush.bf16.msra.mxu0 0
  %80 = vmatpush.bf16.msra.mxu0 0
  %81 = vmatpush.bf16.msra.mxu0 0
  %82 = vmatpush.bf16.msra.mxu0 0
  %83 = vmatpush.bf16.msra.mxu0 0
  %84 = vmatpush.bf16.msra.mxu0 %v68
  %85 = vmatpush.bf16.msra.mxu0 %v67
  %86 = vmatmul.bf16.gmra.mxu0 %v73
  %v87 = vpop.f32.mrf.mxu0
  %v88 = vadd.f32 %v47, %v87
  %v89 = vpop.f32.mrf.mxu0
  %v90 = vadd.f32 %v47, %v89
  %91 = vmatmul.bf16.gmra.mxu0 %v76
  %v92 = vpop.f32.mrf.mxu0
  %v93 = vadd.f32 %v47, %v92
  %v94 = vpop.f32.mrf.mxu0
  %v95 = vadd.f32 %v47, %v94
  %96 = vdwg.mxu0
  %v97 = vpack.c.bf16 %v88, %v88
  %v98 = vpack.c.bf16 %v90, %v90
  %v99 = vpack.c.bf16 %v93, %v93
  %v100 = vpack.c.bf16 %v95, %v95
  %vm101 = vcmask 125952
  %102 = vst.msk [vmem:[%s7] sm:$0xf] %vm101, %v97
  %103 = vst.msk [vmem:[%s7 + $0x4] sm:$0xf] %vm101, %v98
  %104 = vst.msk [vmem:[%s7 + $0x8] sm:$0xf] %vm101, %v99
  %105 = vst.msk [vmem:[%s7 + $0xc] sm:$0xf] %vm101, %v100
  %v106 = vld [vmem:[%s6] sm:$0x1]
  %v108 = vperm.slane %v106, 0
  %v114 = vunpack.c.l.b16 %v33
  %v115 = vunpack.c.l.b16 %v34
  %v116 = vunpack.c.l.b16 %v35
  %v117 = vunpack.c.l.b16 %v36
  %v118 = vpack.c.b16 %v115, %v114
  %v119 = vpack.c.b16 %v117, %v116
  %122 = vmatpush.bf16.msra.mxu0 0
  %123 = vmatpush.bf16.msra.mxu0 0
  %124 = vmatpush.bf16.msra.mxu0 0
  %125 = vmatpush.bf16.msra.mxu0 0
  %126 = vmatpush.bf16.msra.mxu0 0
  %127 = vmatpush.bf16.msra.mxu0 0
  %128 = vmatpush.bf16.msra.mxu0 %v119
  %129 = vmatpush.bf16.msra.mxu0 %v118
  %130 = vmatmul.bf16.gmra.mxu0 %v73
  %v131 = vpop.f32.mrf.mxu0
  %v132 = vadd.f32 %v108, %v131
  %v133 = vpop.f32.mrf.mxu0
  %v134 = vadd.f32 %v108, %v133
  %135 = vmatmul.bf16.gmra.mxu0 %v76
  %v136 = vpop.f32.mrf.mxu0
  %v137 = vadd.f32 %v108, %v136
  %v138 = vpop.f32.mrf.mxu0
  %v139 = vadd.f32 %v108, %v138
  %140 = vdwg.mxu0
  %v141 = vpack.c.bf16 %v132, %v132
  %v142 = vpack.c.bf16 %v134, %v134
  %v143 = vpack.c.bf16 %v137, %v137
  %v144 = vpack.c.bf16 %v139, %v139
  %145 = vst.msk [vmem:[%s8] sm:$0xf] %vm101, %v141
  %146 = vst.msk [vmem:[%s8 + $0x4] sm:$0xf] %vm101, %v142
  %147 = vst.msk [vmem:[%s8 + $0x8] sm:$0xf] %vm101, %v143
  %148 = vst.msk [vmem:[%s8 + $0xc] sm:$0xf] %vm101, %v144
  %v149 = vld [vmem:[%s7] sm:$0xf]
  %v150 = vld [vmem:[%s7 + $0x4] sm:$0xf]
  %v151 = vunpack.c.l.bf16 %v149
  %v152 = vunpack.c.l.bf16 %v150
  %s153 = scalar_lea.vmem %s8, 8
  %v154 = vld [vmem:[%s153] sm:$0xf]
  %v155 = vld [vmem:[%s153 + $0x4] sm:$0xf]
  %v156 = vunpack.c.l.bf16 %v154
  %v157 = vunpack.c.l.bf16 %v155
  %v160 = vunpack.c.l.b16 %v37
  %v161 = vunpack.c.l.b16 %v38
  %v162 = vpack.c.b16 %v161, %v160
  %vm164 = vcmask 130048
  %v166 = vsel %vm164, 0, 0
  %168 = vmatpush.bf16.msra.mxu0 0
  %169 = vmatpush.bf16.msra.mxu0 0
  %170 = vmatpush.bf16.msra.mxu0 0
  %171 = vmatpush.bf16.msra.mxu0 0
  %172 = vmatpush.bf16.msra.mxu0 0
  %173 = vmatpush.bf16.msra.mxu0 0
  %174 = vmatpush.bf16.msra.mxu0 0
  %175 = vmatpush.bf16.msra.mxu0 %v162
  %176 = vmatmul.bf16.gmra.mxu0 %v166
  %v177 = vpop.f32.mrf.mxu0
  %v178 = vadd.f32 0.0, %v177
  %v179 = vpop.f32.mrf.mxu0
  %v180 = vadd.f32 0.0, %v179
  %181 = vdwg.mxu0
  %v182 = vadd.f32 %v151, %v178
  %v183 = vadd.f32 %v152, %v180
  %v184 = vtanh.pop %v182
  %v185 = vtanh.pop %v183
  %v186 = vpack.c.bf16 %v184, %v184
  %v187 = vpack.c.bf16 %v185, %v185
  %v190 = vunpack.c.l.b16 %v39
  %v191 = vunpack.c.l.b16 %v40
  %v192 = vpack.c.b16 %v191, %v190
  %194 = vmatpush.bf16.msra.mxu0 0
  %195 = vmatpush.bf16.msra.mxu0 0
  %196 = vmatpush.bf16.msra.mxu0 0
  %197 = vmatpush.bf16.msra.mxu0 0
  %198 = vmatpush.bf16.msra.mxu0 0
  %199 = vmatpush.bf16.msra.mxu0 0
  %200 = vmatpush.bf16.msra.mxu0 0
  %201 = vmatpush.bf16.msra.mxu0 %v192
  %202 = vmatmul.bf16.gmra.mxu0 %v166
  %v203 = vpop.f32.mrf.mxu0
  %v204 = vadd.f32 0.0, %v203
  %v205 = vpop.f32.mrf.mxu0
  %v206 = vadd.f32 0.0, %v205
  %207 = vdwg.mxu0
  %v208 = vadd.f32 %v156, %v204
  %v209 = vadd.f32 %v157, %v206
  %v210 = vtanh.pop %v208
  %v211 = vtanh.pop %v209
  %v212 = vpack.c.bf16 %v210, %v210
  %v213 = vpack.c.bf16 %v211, %v211
  %214 = vst.msk [vmem:[%s7] sm:$0xf] %vm101, %v186
  %215 = vst.msk [vmem:[%s7 + $0x4] sm:$0xf] %vm101, %v187
  %216 = vst.msk [vmem:[%s153] sm:$0xf] %vm101, %v212
  %217 = vst.msk [vmem:[%s153 + $0x4] sm:$0xf] %vm101, %v213
  %s218 = scalar_lea.vmem %s7, 8
  %v219 = vld [vmem:[%s218] sm:$0xf]
  %v220 = vld [vmem:[%s218 + $0x4] sm:$0xf]
  %v221 = vunpack.c.l.bf16 %v219
  %v222 = vunpack.c.l.bf16 %v220
  %v223 = vld [vmem:[%s8] sm:$0xf]
  %v224 = vld [vmem:[%s8 + $0x4] sm:$0xf]
  %v225 = vunpack.c.l.bf16 %v223
  %v226 = vunpack.c.l.bf16 %v224
  %v229 = vunpack.c.l.b16 %v186
  %v230 = vunpack.c.l.b16 %v187
  %v231 = vpack.c.b16 %v230, %v229
  %v233 = vsel %vm164, %v231, 0
  %235 = vmatpush.bf16.msra.mxu0 0
  %236 = vmatpush.bf16.msra.mxu0 0
  %237 = vmatpush.bf16.msra.mxu0 0
  %238 = vmatpush.bf16.msra.mxu0 0
  %239 = vmatpush.bf16.msra.mxu0 0
  %240 = vmatpush.bf16.msra.mxu0 0
  %241 = vmatpush.bf16.msra.mxu0 0
  %242 = vmatpush.bf16.msra.mxu0 %v162
  %243 = vmatmul.bf16.gmra.mxu0 %v233
  %v244 = vpop.f32.mrf.mxu0
  %v245 = vadd.f32 0.0, %v244
  %v246 = vpop.f32.mrf.mxu0
  %v247 = vadd.f32 0.0, %v246
  %248 = vdwg.mxu0
  %v249 = vadd.f32 %v221, %v245
  %v250 = vadd.f32 %v222, %v247
  %v251 = vtanh.pop %v249
  %v252 = vtanh.pop %v250
  %v253 = vpack.c.bf16 %v251, %v251
  %v254 = vpack.c.bf16 %v252, %v252
  %v257 = vunpack.c.l.b16 %v212
  %v258 = vunpack.c.l.b16 %v213
  %v259 = vpack.c.b16 %v258, %v257
  %v261 = vsel %vm164, %v259, 0
  %263 = vmatpush.bf16.msra.mxu0 0
  %264 = vmatpush.bf16.msra.mxu0 0
  %265 = vmatpush.bf16.msra.mxu0 0
  %266 = vmatpush.bf16.msra.mxu0 0
  %267 = vmatpush.bf16.msra.mxu0 0
  %268 = vmatpush.bf16.msra.mxu0 0
  %269 = vmatpush.bf16.msra.mxu0 0
  %270 = vmatpush.bf16.msra.mxu0 %v192
  %271 = vmatmul.bf16.gmra.mxu0 %v261
  %v272 = vpop.f32.mrf.mxu0
  %v273 = vadd.f32 0.0, %v272
  %v274 = vpop.f32.mrf.mxu0
  %v275 = vadd.f32 0.0, %v274
  %276 = vdwg.mxu0
  %v277 = vadd.f32 %v225, %v273
  %v278 = vadd.f32 %v226, %v275
  %v279 = vtanh.pop %v277
  %v280 = vtanh.pop %v278
  %v281 = vpack.c.bf16 %v279, %v279
  %v282 = vpack.c.bf16 %v280, %v280
  %283 = vst.msk [vmem:[%s218] sm:$0xf] %vm101, %v253
  %284 = vst.msk [vmem:[%s218 + $0x4] sm:$0xf] %vm101, %v254
  %285 = vst.msk [vmem:[%s8] sm:$0xf] %vm101, %v281
  %286 = vst.msk [vmem:[%s8 + $0x4] sm:$0xf] %vm101, %v282
  // Predicated region
  $region30: #{_lambda_.3} parent=0 // pred_check
    _
  $region31: #{_lambda_.3} parent=0 // pred_check_branch
    %288 = sbr.rel (0) target = $region33
  $region32: #{_lambda_.3} parent=0 // pred_region
    _
  $region33: #{_lambda_.3} parent=0 // pred_fallthru
    _
  // Predicated region
  $region34: #{_lambda_.3} parent=0 // pred_check
    _
  $region35: #{_lambda_.3} parent=0 // pred_check_branch
    %290 = sbr.rel (0) target = $region37
  $region36: #{_lambda_.3} parent=0 // pred_region
    _
  $region37: #{_lambda_.3} parent=0 // pred_fallthru
    _
  // Predicated region
  $region38: #{_lambda_.3} parent=0 // pred_check
    _
  $region39: #{_lambda_.3} parent=0 // pred_check_branch
    %292 = sbr.rel (0) target = $region41
  $region40: #{_lambda_.3} parent=0 // pred_region
    _
  $region41: #{_lambda_.3} parent=0 // pred_fallthru
    _
  // Predicated region
  $region42: #{_lambda_.3} parent=0 // pred_check
    _
  $region43: #{_lambda_.3} parent=0 // pred_check_branch
    %294 = sbr.rel (0) target = $region45
  $region44: #{_lambda_.3} parent=0 // pred_region
    _
  $region45: #{_lambda_.3} parent=0 // pred_fallthru
    _

// kernel: _lambda_.2
$region0: #{_lambda_.2}
  #allocation0 [shape = 'u32[]', space=smem, size = 0x4, offset = 0x4, fixed_abs, tag = 'smem constant byte address 0x4 - core index']
  #allocation1 [shape = 'u32[72,128]{1,0:T(1,128)}', space=vmem, size = 0x9000, scoped, tag = 'internal scratch']
  %s0 = inlined_call_operand.vmem [shape: bf16[8,16,32], index: 0, kind: input, shape index: {}]
  %s1 = inlined_call_operand.vmem [shape: bf16[32,16], index: 1, kind: input, shape index: {}]
  %s2 = inlined_call_operand.vmem [shape: bf16[32,16], index: 2, kind: input, shape index: {}]
  %s3 = inlined_call_operand.vmem [shape: bf16[16,16], index: 3, kind: input, shape index: {}]
  %s4 = inlined_call_operand.vmem [shape: bf16[16,16], index: 4, kind: input, shape index: {}]
  %s5 = inlined_call_operand.vmem [shape: f32[1,16], index: 5, kind: input, shape index: {}]
  %s6 = inlined_call_operand.vmem [shape: f32[1,16], index: 6, kind: input, shape index: {}]
  %s7 = inlined_call_operand.vmem [shape: bf16[8,16,16], index: 7, kind: output, shape index: {0}]
  %s8 = inlined_call_operand.vmem [shape: bf16[8,16,16], index: 8, kind: output, shape index: {1}]
  %9 = xla_tuple %s7, %s8
  %s10 = sld [smem:[#allocation0]]
  $region46: #{_lambda_.2} parent=0
    _
  %s12 = ssub.s32 1, %s10
  %s13 = scalar_select 0, %s12, %s10
  // Predicated region
  $region2: #{_lambda_.2} parent=0 // pred_check
    _
  $region3: #{_lambda_.2} parent=0 // pred_check_branch
    %15 = sbr.rel (0) target = $region5
  $region4: #{_lambda_.2} parent=0 // pred_region
    _
  $region5: #{_lambda_.2} parent=0 // pred_fallthru
    _
  // Predicated region
  $region6: #{_lambda_.2} parent=0 // pred_check
    _
  $region7: #{_lambda_.2} parent=0 // pred_check_branch
    %17 = sbr.rel (0) target = $region9
  $region8: #{_lambda_.2} parent=0 // pred_region
    _
  $region9: #{_lambda_.2} parent=0 // pred_fallthru
    _
  // Predicated region
  $region10: #{_lambda_.2} parent=0 // pred_check
    _
  $region11: #{_lambda_.2} parent=0 // pred_check_branch
    %19 = sbr.rel (0) target = $region13
  $region12: #{_lambda_.2} parent=0 // pred_region
    _
  $region13: #{_lambda_.2} parent=0 // pred_fallthru
    _
  // Predicated region
  $region14: #{_lambda_.2} parent=0 // pred_check
    _
  $region15: #{_lambda_.2} parent=0 // pred_check_branch
    %21 = sbr.rel (0) target = $region17
  $region16: #{_lambda_.2} parent=0 // pred_region
    _
  $region17: #{_lambda_.2} parent=0 // pred_fallthru
    _
  // Predicated region
  $region18: #{_lambda_.2} parent=0 // pred_check
    _
  $region19: #{_lambda_.2} parent=0 // pred_check_branch
    %23 = sbr.rel (0) target = $region21
  $region20: #{_lambda_.2} parent=0 // pred_region
    _
  $region21: #{_lambda_.2} parent=0 // pred_fallthru
    _
  // Predicated region
  $region22: #{_lambda_.2} parent=0 // pred_check
    _
  $region23: #{_lambda_.2} parent=0 // pred_check_branch
    %25 = sbr.rel (0) target = $region25
  $region24: #{_lambda_.2} parent=0 // pred_region
    _
  $region25: #{_lambda_.2} parent=0 // pred_fallthru
    _
  // Predicated region
  $region26: #{_lambda_.2} parent=0 // pred_check
    _
  $region27: #{_lambda_.2} parent=0 // pred_check_branch
    %27 = sbr.rel (0) target = $region29
  $region28: #{_lambda_.2} parent=0 // pred_region
    _
  $region29: #{_lambda_.2} parent=0 // pred_fallthru
    _
  %v29 = vld [vmem:[%s1] sm:$0xf]
  %v30 = vld [vmem:[%s1 + $0x4] sm:$0xf]
  %v31 = vld [vmem:[%s1 + $0x8] sm:$0xf]
  %v32 = vld [vmem:[%s1 + $0xc] sm:$0xf]
  %v33 = vld [vmem:[%s2] sm:$0xf]
  %v34 = vld [vmem:[%s2 + $0x4] sm:$0xf]
  %v35 = vld [vmem:[%s2 + $0x8] sm:$0xf]
  %v36 = vld [vmem:[%s2 + $0xc] sm:$0xf]
  %v37 = vld [vmem:[%s3] sm:$0xf]
  %v38 = vld [vmem:[%s3 + $0x4] sm:$0xf]
  %v39 = vld [vmem:[%s4] sm:$0xf]
  %v40 = vld [vmem:[%s4 + $0x4] sm:$0xf]
  %v41 = vld [vmem:[%s0] sm:$0xf]
  %v42 = vld [vmem:[%s0 + $0x4] sm:$0xf]
  %v43 = vld [vmem:[%s0 + $0x8] sm:$0xf]
  %v44 = vld [vmem:[%s0 + $0xc] sm:$0xf]
  %v45 = vld [vmem:[%s0 + $0x10] sm:$0xf]
  %v46 = vld [vmem:[%s0 + $0x14] sm:$0xf]
  %v47 = vld [vmem:[%s0 + $0x18] sm:$0xf]
  %v48 = vld [vmem:[%s0 + $0x1c] sm:$0xf]
  %v49 = vld [vmem:[%s0 + $0x20] sm:$0xf]
  %v50 = vld [vmem:[%s0 + $0x24] sm:$0xf]
  %v51 = vld [vmem:[%s0 + $0x28] sm:$0xf]
  %v52 = vld [vmem:[%s0 + $0x2c] sm:$0xf]
  %v53 = vld [vmem:[%s0 + $0x30] sm:$0xf]
  %v54 = vld [vmem:[%s0 + $0x34] sm:$0xf]
  %v55 = vld [vmem:[%s0 + $0x38] sm:$0xf]
  %v56 = vld [vmem:[%s0 + $0x3c] sm:$0xf]
  %v57 = vld [vmem:[%s5] sm:$0x1]
  %v59 = vperm.slane %v57, 0
  %v77 = vunpack.c.l.b16 %v41
  %v78 = vunpack.c.l.b16 %v42
  %v79 = vunpack.c.l.b16 %v43
  %v80 = vunpack.c.l.b16 %v44
  %v81 = vunpack.c.l.b16 %v45
  %v82 = vunpack.c.l.b16 %v46
  %v83 = vunpack.c.l.b16 %v47
  %v84 = vunpack.c.l.b16 %v48
  %v85 = vunpack.c.l.b16 %v49
  %v86 = vunpack.c.l.b16 %v50
  %v87 = vunpack.c.l.b16 %v51
  %v88 = vunpack.c.l.b16 %v52
  %v89 = vunpack.c.l.b16 %v53
  %v90 = vunpack.c.l.b16 %v54
  %v91 = vunpack.c.l.b16 %v55
  %v92 = vunpack.c.l.b16 %v56
  %v93 = vpack.c.b16 %v78, %v77
  %v94 = vpack.c.b16 %v80, %v79
  %v95 = vpack.c.b16 %v82, %v81
  %v96 = vpack.c.b16 %v84, %v83
  %v97 = vpack.c.b16 %v86, %v85
  %v98 = vpack.c.b16 %v88, %v87
  %v99 = vpack.c.b16 %v90, %v89
  %v100 = vpack.c.b16 %v92, %v91
  %v105 = vunpack.c.l.b16 %v29
  %v106 = vunpack.c.l.b16 %v30
  %v107 = vunpack.c.l.b16 %v31
  %v108 = vunpack.c.l.b16 %v32
  %v109 = vpack.c.b16 %v106, %v105
  %v110 = vpack.c.b16 %v108, %v107
  %vm113 = vcmask 261120
  %v115 = vsel %vm113, %v93, 0
  %v118 = vsel %vm113, %v94, 0
  %v121 = vsel %vm113, %v95, 0
  %v124 = vsel %vm113, %v96, 0
  %v127 = vsel %vm113, %v97, 0
  %v130 = vsel %vm113, %v98, 0
  %v133 = vsel %vm113, %v99, 0
  %v136 = vsel %vm113, %v100, 0
  %138 = vmatpush.bf16.msra.mxu0 0
  %139 = vmatpush.bf16.msra.mxu0 0
  %140 = vmatpush.bf16.msra.mxu0 0
  %141 = vmatpush.bf16.msra.mxu0 0
  %142 = vmatpush.bf16.msra.mxu0 0
  %143 = vmatpush.bf16.msra.mxu0 0
  %144 = vmatpush.bf16.msra.mxu0 %v110
  %145 = vmatpush.bf16.msra.mxu0 %v109
  %146 = vmatmul.bf16.gmra.mxu0 %v115
  %v147 = vpop.f32.mrf.mxu0
  %v148 = vadd.f32 %v59, %v147
  %v149 = vpop.f32.mrf.mxu0
  %v150 = vadd.f32 %v59, %v149
  %151 = vmatmul.bf16.gmra.mxu0 %v118
  %v152 = vpop.f32.mrf.mxu0
  %v153 = vadd.f32 %v59, %v152
  %v154 = vpop.f32.mrf.mxu0
  %v155 = vadd.f32 %v59, %v154
  %156 = vmatmul.bf16.gmra.mxu0 %v121
  %v157 = vpop.f32.mrf.mxu0
  %v158 = vadd.f32 %v59, %v157
  %v159 = vpop.f32.mrf.mxu0
  %v160 = vadd.f32 %v59, %v159
  %161 = vmatmul.bf16.gmra.mxu0 %v124
  %v162 = vpop.f32.mrf.mxu0
  %v163 = vadd.f32 %v59, %v162
  %v164 = vpop.f32.mrf.mxu0
  %v165 = vadd.f32 %v59, %v164
  %166 = vmatmul.bf16.gmra.mxu0 %v127
  %v167 = vpop.f32.mrf.mxu0
  %v168 = vadd.f32 %v59, %v167
  %v169 = vpop.f32.mrf.mxu0
  %v170 = vadd.f32 %v59, %v169
  %171 = vmatmul.bf16.gmra.mxu0 %v130
  %v172 = vpop.f32.mrf.mxu0
  %v173 = vadd.f32 %v59, %v172
  %v174 = vpop.f32.mrf.mxu0
  %v175 = vadd.f32 %v59, %v174
  %176 = vmatmul.bf16.gmra.mxu0 %v133
  %v177 = vpop.f32.mrf.mxu0
  %v178 = vadd.f32 %v59, %v177
  %v179 = vpop.f32.mrf.mxu0
  %v180 = vadd.f32 %v59, %v179
  %181 = vmatmul.bf16.gmra.mxu0 %v136
  %v182 = vpop.f32.mrf.mxu0
  %v183 = vadd.f32 %v59, %v182
  %v184 = vpop.f32.mrf.mxu0
  %v185 = vadd.f32 %v59, %v184
  %186 = vdwg.mxu0
  %v187 = vpack.c.bf16 %v148, %v148
  %v188 = vpack.c.bf16 %v150, %v150
  %v189 = vpack.c.bf16 %v153, %v153
  %v190 = vpack.c.bf16 %v155, %v155
  %v191 = vpack.c.bf16 %v158, %v158
  %v192 = vpack.c.bf16 %v160, %v160
  %v193 = vpack.c.bf16 %v163, %v163
  %v194 = vpack.c.bf16 %v165, %v165
  %v195 = vpack.c.bf16 %v168, %v168
  %v196 = vpack.c.bf16 %v170, %v170
  %v197 = vpack.c.bf16 %v173, %v173
  %v198 = vpack.c.bf16 %v175, %v175
  %v199 = vpack.c.bf16 %v178, %v178
  %v200 = vpack.c.bf16 %v180, %v180
  %v201 = vpack.c.bf16 %v183, %v183
  %v202 = vpack.c.bf16 %v185, %v185
  %vm203 = vcmask 125952
  %204 = vst.msk [vmem:[%s7] sm:$0xf] %vm203, %v187
  %205 = vst.msk [vmem:[%s7 + $0x4] sm:$0xf] %vm203, %v188
  %206 = vst.msk [vmem:[%s7 + $0x8] sm:$0xf] %vm203, %v189
  %207 = vst.msk [vmem:[%s7 + $0xc] sm:$0xf] %vm203, %v190
  %208 = vst.msk [vmem:[%s7 + $0x10] sm:$0xf] %vm203, %v191
  %209 = vst.msk [vmem:[%s7 + $0x14] sm:$0xf] %vm203, %v192
  %210 = vst.msk [vmem:[%s7 + $0x18] sm:$0xf] %vm203, %v193
  %211 = vst.msk [vmem:[%s7 + $0x1c] sm:$0xf] %vm203, %v194
  %212 = vst.msk [vmem:[%s7 + $0x20] sm:$0xf] %vm203, %v195
  %213 = vst.msk [vmem:[%s7 + $0x24] sm:$0xf] %vm203, %v196
  %214 = vst.msk [vmem:[%s7 + $0x28] sm:$0xf] %vm203, %v197
  %215 = vst.msk [vmem:[%s7 + $0x2c] sm:$0xf] %vm203, %v198
  %216 = vst.msk [vmem:[%s7 + $0x30] sm:$0xf] %vm203, %v199
  %217 = vst.msk [vmem:[%s7 + $0x34] sm:$0xf] %vm203, %v200
  %218 = vst.msk [vmem:[%s7 + $0x38] sm:$0xf] %vm203, %v201
  %219 = vst.msk [vmem:[%s7 + $0x3c] sm:$0xf] %vm203, %v202
  %v220 = vld [vmem:[%s6] sm:$0x1]
  %v222 = vperm.slane %v220, 0
  %v228 = vunpack.c.l.b16 %v33
  %v229 = vunpack.c.l.b16 %v34
  %v230 = vunpack.c.l.b16 %v35
  %v231 = vunpack.c.l.b16 %v36
  %v232 = vpack.c.b16 %v229, %v228
  %v233 = vpack.c.b16 %v231, %v230
  %236 = vmatpush.bf16.msra.mxu0 0
  %237 = vmatpush.bf16.msra.mxu0 0
  %238 = vmatpush.bf16.msra.mxu0 0
  %239 = vmatpush.bf16.msra.mxu0 0
  %240 = vmatpush.bf16.msra.mxu0 0
  %241 = vmatpush.bf16.msra.mxu0 0
  %242 = vmatpush.bf16.msra.mxu0 %v233
  %243 = vmatpush.bf16.msra.mxu0 %v232
  %244 = vmatmul.bf16.gmra.mxu0 %v115
  %v245 = vpop.f32.mrf.mxu0
  %v246 = vadd.f32 %v222, %v245
  %v247 = vpop.f32.mrf.mxu0
  %v248 = vadd.f32 %v222, %v247
  %249 = vmatmul.bf16.gmra.mxu0 %v118
  %v250 = vpop.f32.mrf.mxu0
  %v251 = vadd.f32 %v222, %v250
  %v252 = vpop.f32.mrf.mxu0
  %v253 = vadd.f32 %v222, %v252
  %254 = vmatmul.bf16.gmra.mxu0 %v121
  %v255 = vpop.f32.mrf.mxu0
  %v256 = vadd.f32 %v222, %v255
  %v257 = vpop.f32.mrf.mxu0
  %v258 = vadd.f32 %v222, %v257
  %259 = vmatmul.bf16.gmra.mxu0 %v124
  %v260 = vpop.f32.mrf.mxu0
  %v261 = vadd.f32 %v222, %v260
  %v262 = vpop.f32.mrf.mxu0
  %v263 = vadd.f32 %v222, %v262
  %264 = vmatmul.bf16.gmra.mxu0 %v127
  %v265 = vpop.f32.mrf.mxu0
  %v266 = vadd.f32 %v222, %v265
  %v267 = vpop.f32.mrf.mxu0
  %v268 = vadd.f32 %v222, %v267
  %269 = vmatmul.bf16.gmra.mxu0 %v130
  %v270 = vpop.f32.mrf.mxu0
  %v271 = vadd.f32 %v222, %v270
  %v272 = vpop.f32.mrf.mxu0
  %v273 = vadd.f32 %v222, %v272
  %274 = vmatmul.bf16.gmra.mxu0 %v133
  %v275 = vpop.f32.mrf.mxu0
  %v276 = vadd.f32 %v222, %v275
  %v277 = vpop.f32.mrf.mxu0
  %v278 = vadd.f32 %v222, %v277
  %279 = vmatmul.bf16.gmra.mxu0 %v136
  %v280 = vpop.f32.mrf.mxu0
  %v281 = vadd.f32 %v222, %v280
  %v282 = vpop.f32.mrf.mxu0
  %v283 = vadd.f32 %v222, %v282
  %284 = vdwg.mxu0
  %v285 = vpack.c.bf16 %v246, %v246
  %v286 = vpack.c.bf16 %v248, %v248
  %v287 = vpack.c.bf16 %v251, %v251
  %v288 = vpack.c.bf16 %v253, %v253
  %v289 = vpack.c.bf16 %v256, %v256
  %v290 = vpack.c.bf16 %v258, %v258
  %v291 = vpack.c.bf16 %v261, %v261
  %v292 = vpack.c.bf16 %v263, %v263
  %v293 = vpack.c.bf16 %v266, %v266
  %v294 = vpack.c.bf16 %v268, %v268
  %v295 = vpack.c.bf16 %v271, %v271
  %v296 = vpack.c.bf16 %v273, %v273
  %v297 = vpack.c.bf16 %v276, %v276
  %v298 = vpack.c.bf16 %v278, %v278
  %v299 = vpack.c.bf16 %v281, %v281
  %v300 = vpack.c.bf16 %v283, %v283
  %301 = vst.msk [vmem:[%s8] sm:$0xf] %vm203, %v285
  %302 = vst.msk [vmem:[%s8 + $0x4] sm:$0xf] %vm203, %v286
  %303 = vst.msk [vmem:[%s8 + $0x8] sm:$0xf] %vm203, %v287
  %304 = vst.msk [vmem:[%s8 + $0xc] sm:$0xf] %vm203, %v288
  %305 = vst.msk [vmem:[%s8 + $0x10] sm:$0xf] %vm203, %v289
  %306 = vst.msk [vmem:[%s8 + $0x14] sm:$0xf] %vm203, %v290
  %307 = vst.msk [vmem:[%s8 + $0x18] sm:$0xf] %vm203, %v291
  %308 = vst.msk [vmem:[%s8 + $0x1c] sm:$0xf] %vm203, %v292
  %309 = vst.msk [vmem:[%s8 + $0x20] sm:$0xf] %vm203, %v293
  %310 = vst.msk [vmem:[%s8 + $0x24] sm:$0xf] %vm203, %v294
  %311 = vst.msk [vmem:[%s8 + $0x28] sm:$0xf] %vm203, %v295
  %312 = vst.msk [vmem:[%s8 + $0x2c] sm:$0xf] %vm203, %v296
  %313 = vst.msk [vmem:[%s8 + $0x30] sm:$0xf] %vm203, %v297
  %314 = vst.msk [vmem:[%s8 + $0x34] sm:$0xf] %vm203, %v298
  %315 = vst.msk [vmem:[%s8 + $0x38] sm:$0xf] %vm203, %v299
  %316 = vst.msk [vmem:[%s8 + $0x3c] sm:$0xf] %vm203, %v300
  %v317 = vld [vmem:[%s7] sm:$0xf]
  %v318 = vld [vmem:[%s7 + $0x4] sm:$0xf]
  %v319 = vunpack.c.l.bf16 %v317
  %v320 = vunpack.c.l.bf16 %v318
  %s321 = scalar_lea.vmem %s8, 56
  %v322 = vld [vmem:[%s321] sm:$0xf]
  %v323 = vld [vmem:[%s321 + $0x4] sm:$0xf]
  %v324 = vunpack.c.l.bf16 %v322
  %v325 = vunpack.c.l.bf16 %v323
  %v328 = vunpack.c.l.b16 %v37
  %v329 = vunpack.c.l.b16 %v38
  %v330 = vpack.c.b16 %v329, %v328
  %vm332 = vcmask 130048
  %v334 = vsel %vm332, 0, 0
  %336 = vmatpush.bf16.msra.mxu0 0
  %337 = vmatpush.bf16.msra.mxu0 0
  %338 = vmatpush.bf16.msra.mxu0 0
  %339 = vmatpush.bf16.msra.mxu0 0
  %340 = vmatpush.bf16.msra.mxu0 0
  %341 = vmatpush.bf16.msra.mxu0 0
  %342 = vmatpush.bf16.msra.mxu0 0
  %343 = vmatpush.bf16.msra.mxu0 %v330
  %344 = vmatmul.bf16.gmra.mxu0 %v334
  %v345 = vpop.f32.mrf.mxu0
  %v346 = vadd.f32 0.0, %v345
  %v347 = vpop.f32.mrf.mxu0
  %v348 = vadd.f32 0.0, %v347
  %349 = vdwg.mxu0
  %v350 = vadd.f32 %v319, %v346
  %v351 = vadd.f32 %v320, %v348
  %v352 = vtanh.pop %v350
  %v353 = vtanh.pop %v351
  %v354 = vpack.c.bf16 %v352, %v352
  %v355 = vpack.c.bf16 %v353, %v353
  %v358 = vunpack.c.l.b16 %v39
  %v359 = vunpack.c.l.b16 %v40
  %v360 = vpack.c.b16 %v359, %v358
  %362 = vmatpush.bf16.msra.mxu0 0
  %363 = vmatpush.bf16.msra.mxu0 0
  %364 = vmatpush.bf16.msra.mxu0 0
  %365 = vmatpush.bf16.msra.mxu0 0
  %366 = vmatpush.bf16.msra.mxu0 0
  %367 = vmatpush.bf16.msra.mxu0 0
  %368 = vmatpush.bf16.msra.mxu0 0
  %369 = vmatpush.bf16.msra.mxu0 %v360
  %370 = vmatmul.bf16.gmra.mxu0 %v334
  %v371 = vpop.f32.mrf.mxu0
  %v372 = vadd.f32 0.0, %v371
  %v373 = vpop.f32.mrf.mxu0
  %v374 = vadd.f32 0.0, %v373
  %375 = vdwg.mxu0
  %v376 = vadd.f32 %v324, %v372
  %v377 = vadd.f32 %v325, %v374
  %v378 = vtanh.pop %v376
  %v379 = vtanh.pop %v377
  %v380 = vpack.c.bf16 %v378, %v378
  %v381 = vpack.c.bf16 %v379, %v379
  %382 = vst.msk [vmem:[%s7] sm:$0xf] %vm203, %v354
  %383 = vst.msk [vmem:[%s7 + $0x4] sm:$0xf] %vm203, %v355
  %384 = vst.msk [vmem:[%s321] sm:$0xf] %vm203, %v380
  %385 = vst.msk [vmem:[%s321 + $0x4] sm:$0xf] %vm203, %v381
  %s386 = scalar_lea.vmem %s7, 8
  %v387 = vld [vmem:[%s386] sm:$0xf]
  %v388 = vld [vmem:[%s386 + $0x4] sm:$0xf]
  %v389 = vunpack.c.l.bf16 %v387
  %v390 = vunpack.c.l.bf16 %v388
  %s391 = scalar_lea.vmem %s8, 48
  %v392 = vld [vmem:[%s391] sm:$0xf]
  %v393 = vld [vmem:[%s391 + $0x4] sm:$0xf]
  %v394 = vunpack.c.l.bf16 %v392
  %v395 = vunpack.c.l.bf16 %v393
  %v398 = vunpack.c.l.b16 %v354
  %v399 = vunpack.c.l.b16 %v355
  %v400 = vpack.c.b16 %v399, %v398
  %v402 = vsel %vm332, %v400, 0
  %404 = vmatpush.bf16.msra.mxu0 0
  %405 = vmatpush.bf16.msra.mxu0 0
  %406 = vmatpush.bf16.msra.mxu0 0
  %407 = vmatpush.bf16.msra.mxu0 0
  %408 = vmatpush.bf16.msra.mxu0 0
  %409 = vmatpush.bf16.msra.mxu0 0
  %410 = vmatpush.bf16.msra.mxu0 0
  %411 = vmatpush.bf16.msra.mxu0 %v330
  %412 = vmatmul.bf16.gmra.mxu0 %v402
  %v413 = vpop.f32.mrf.mxu0
  %v414 = vadd.f32 0.0, %v413
  %v415 = vpop.f32.mrf.mxu0
  %v416 = vadd.f32 0.0, %v415
  %417 = vdwg.mxu0
  %v418 = vadd.f32 %v389, %v414
  %v419 = vadd.f32 %v390, %v416
  %v420 = vtanh.pop %v418
  %v421 = vtanh.pop %v419
  %v422 = vpack.c.bf16 %v420, %v420
  %v423 = vpack.c.bf16 %v421, %v421
  %v426 = vunpack.c.l.b16 %v380
  %v427 = vunpack.c.l.b16 %v381
  %v428 = vpack.c.b16 %v427, %v426
  %v430 = vsel %vm332, %v428, 0
  %432 = vmatpush.bf16.msra.mxu0 0
  %433 = vmatpush.bf16.msra.mxu0 0
  %434 = vmatpush.bf16.msra.mxu0 0
  %435 = vmatpush.bf16.msra.mxu0 0
  %436 = vmatpush.bf16.msra.mxu0 0
  %437 = vmatpush.bf16.msra.mxu0 0
  %438 = vmatpush.bf16.msra.mxu0 0
  %439 = vmatpush.bf16.msra.mxu0 %v360
  %440 = vmatmul.bf16.gmra.mxu0 %v430
  %v441 = vpop.f32.mrf.mxu0
  %v442 = vadd.f32 0.0, %v441
  %v443 = vpop.f32.mrf.mxu0
  %v444 = vadd.f32 0.0, %v443
  %445 = vdwg.mxu0
  %v446 = vadd.f32 %v394, %v442
  %v447 = vadd.f32 %v395, %v444
  %v448 = vtanh.pop %v446
  %v449 = vtanh.pop %v447
  %v450 = vpack.c.bf16 %v448, %v448
  %v451 = vpack.c.bf16 %v449, %v449
  %452 = vst.msk [vmem:[%s386] sm:$0xf] %vm203, %v422
  %453 = vst.msk [vmem:[%s386 + $0x4] sm:$0xf] %vm203, %v423
  %454 = vst.msk [vmem:[%s391] sm:$0xf] %vm203, %v450
  %455 = vst.msk [vmem:[%s391 + $0x4] sm:$0xf] %vm203, %v451
  %s456 = scalar_lea.vmem %s7, 16
  %v457 = vld [vmem:[%s456] sm:$0xf]
  %v458 = vld [vmem:[%s456 + $0x4] sm:$0xf]
  %v459 = vunpack.c.l.bf16 %v457
  %v460 = vunpack.c.l.bf16 %v458
  %s461 = scalar_lea.vmem %s8, 40
  %v462 = vld [vmem:[%s461] sm:$0xf]
  %v463 = vld [vmem:[%s461 + $0x4] sm:$0xf]
  %v464 = vunpack.c.l.bf16 %v462
  %v465 = vunpack.c.l.bf16 %v463
  %v468 = vunpack.c.l.b16 %v422
  %v469 = vunpack.c.l.b16 %v423
  %v470 = vpack.c.b16 %v469, %v468
  %v472 = vsel %vm332, %v470, 0
  %474 = vmatpush.bf16.msra.mxu0 0
  %475 = vmatpush.bf16.msra.mxu0 0
  %476 = vmatpush.bf16.msra.mxu0 0
  %477 = vmatpush.bf16.msra.mxu0 0
  %478 = vmatpush.bf16.msra.mxu0 0
  %479 = vmatpush.bf16.msra.mxu0 0
  %480 = vmatpush.bf16.msra.mxu0 0
  %481 = vmatpush.bf16.msra.mxu0 %v330
  %482 = vmatmul.bf16.gmra.mxu0 %v472
  %v483 = vpop.f32.mrf.mxu0
  %v484 = vadd.f32 0.0, %v483
  %v485 = vpop.f32.mrf.mxu0
  %v486 = vadd.f32 0.0, %v485
  %487 = vdwg.mxu0
  %v488 = vadd.f32 %v459, %v484
  %v489 = vadd.f32 %v460, %v486
  %v490 = vtanh.pop %v488
  %v491 = vtanh.pop %v489
  %v492 = vpack.c.bf16 %v490, %v490
  %v493 = vpack.c.bf16 %v491, %v491
  %v496 = vunpack.c.l.b16 %v450
  %v497 = vunpack.c.l.b16 %v451
  %v498 = vpack.c.b16 %v497, %v496
  %v500 = vsel %vm332, %v498, 0
  %502 = vmatpush.bf16.msra.mxu0 0
  %503 = vmatpush.bf16.msra.mxu0 0
  %504 = vmatpush.bf16.msra.mxu0 0
  %505 = vmatpush.bf16.msra.mxu0 0
  %506 = vmatpush.bf16.msra.mxu0 0
  %507 = vmatpush.bf16.msra.mxu0 0
  %508 = vmatpush.bf16.msra.mxu0 0
  %509 = vmatpush.bf16.msra.mxu0 %v360
  %510 = vmatmul.bf16.gmra.mxu0 %v500
  %v511 = vpop.f32.mrf.mxu0
  %v512 = vadd.f32 0.0, %v511
  %v513 = vpop.f32.mrf.mxu0
  %v514 = vadd.f32 0.0, %v513
  %515 = vdwg.mxu0
  %v516 = vadd.f32 %v464, %v512
  %v517 = vadd.f32 %v465, %v514
  %v518 = vtanh.pop %v516
  %v519 = vtanh.pop %v517
  %v520 = vpack.c.bf16 %v518, %v518
  %v521 = vpack.c.bf16 %v519, %v519
  %522 = vst.msk [vmem:[%s456] sm:$0xf] %vm203, %v492
  %523 = vst.msk [vmem:[%s456 + $0x4] sm:$0xf] %vm203, %v493
  %524 = vst.msk [vmem:[%s461] sm:$0xf] %vm203, %v520
  %525 = vst.msk [vmem:[%s461 + $0x4] sm:$0xf] %vm203, %v521
  %s526 = scalar_lea.vmem %s7, 24
  %v527 = vld [vmem:[%s526] sm:$0xf]
  %v528 = vld [vmem:[%s526 + $0x4] sm:$0xf]
  %v529 = vunpack.c.l.bf16 %v527
  %v530 = vunpack.c.l.bf16 %v528
  %s531 = scalar_lea.vmem %s8, 32
  %v532 = vld [vmem:[%s531] sm:$0xf]
  %v533 = vld [vmem:[%s531 + $0x4] sm:$0xf]
  %v534 = vunpack.c.l.bf16 %v532
  %v535 = vunpack.c.l.bf16 %v533
  %v538 = vunpack.c.l.b16 %v492
  %v539 = vunpack.c.l.b16 %v493
  %v540 = vpack.c.b16 %v539, %v538
  %v542 = vsel %vm332, %v540, 0
  %544 = vmatpush.bf16.msra.mxu0 0
  %545 = vmatpush.bf16.msra.mxu0 0
  %546 = vmatpush.bf16.msra.mxu0 0
  %547 = vmatpush.bf16.msra.mxu0 0
  %548 = vmatpush.bf16.msra.mxu0 0
  %549 = vmatpush.bf16.msra.mxu0 0
  %550 = vmatpush.bf16.msra.mxu0 0
  %551 = vmatpush.bf16.msra.mxu0 %v330
  %552 = vmatmul.bf16.gmra.mxu0 %v542
  %v553 = vpop.f32.mrf.mxu0
  %v554 = vadd.f32 0.0, %v553
  %v555 = vpop.f32.mrf.mxu0
  %v556 = vadd.f32 0.0, %v555
  %557 = vdwg.mxu0
  %v558 = vadd.f32 %v529, %v554
  %v559 = vadd.f32 %v530, %v556
  %v560 = vtanh.pop %v558
  %v561 = vtanh.pop %v559
  %v562 = vpack.c.bf16 %v560, %v560
  %v563 = vpack.c.bf16 %v561, %v561
  %v566 = vunpack.c.l.b16 %v520
  %v567 = vunpack.c.l.b16 %v521
  %v568 = vpack.c.b16 %v567, %v566
  %v570 = vsel %vm332, %v568, 0
  %572 = vmatpush.bf16.msra.mxu0 0
  %573 = vmatpush.bf16.msra.mxu0 0
  %574 = vmatpush.bf16.msra.mxu0 0
  %575 = vmatpush.bf16.msra.mxu0 0
  %576 = vmatpush.bf16.msra.mxu0 0
  %577 = vmatpush.bf16.msra.mxu0 0
  %578 = vmatpush.bf16.msra.mxu0 0
  %579 = vmatpush.bf16.msra.mxu0 %v360
  %580 = vmatmul.bf16.gmra.mxu0 %v570
  %v581 = vpop.f32.mrf.mxu0
  %v582 = vadd.f32 0.0, %v581
  %v583 = vpop.f32.mrf.mxu0
  %v584 = vadd.f32 0.0, %v583
  %585 = vdwg.mxu0
  %v586 = vadd.f32 %v534, %v582
  %v587 = vadd.f32 %v535, %v584
  %v588 = vtanh.pop %v586
  %v589 = vtanh.pop %v587
  %v590 = vpack.c.bf16 %v588, %v588
  %v591 = vpack.c.bf16 %v589, %v589
  %592 = vst.msk [vmem:[%s526] sm:$0xf] %vm203, %v562
  %593 = vst.msk [vmem:[%s526 + $0x4] sm:$0xf] %vm203, %v563
  %594 = vst.msk [vmem:[%s531] sm:$0xf] %vm203, %v590
  %595 = vst.msk [vmem:[%s531 + $0x4] sm:$0xf] %vm203, %v591
  %s596 = scalar_lea.vmem %s7, 32
  %v597 = vld [vmem:[%s596] sm:$0xf]
  %v598 = vld [vmem:[%s596 + $0x4] sm:$0xf]
  %v599 = vunpack.c.l.bf16 %v597
  %v600 = vunpack.c.l.bf16 %v598
  %s601 = scalar_lea.vmem %s8, 24
  %v602 = vld [vmem:[%s601] sm:$0xf]
  %v603 = vld [vmem:[%s601 + $0x4] sm:$0xf]
  %v604 = vunpack.c.l.bf16 %v602
  %v605 = vunpack.c.l.bf16 %v603
  %v608 = vunpack.c.l.b16 %v562
  %v609 = vunpack.c.l.b16 %v563
  %v610 = vpack.c.b16 %v609, %v608
  %v612 = vsel %vm332, %v610, 0
  %614 = vmatpush.bf16.msra.mxu0 0
  %615 = vmatpush.bf16.msra.mxu0 0
  %616 = vmatpush.bf16.msra.mxu0 0
  %617 = vmatpush.bf16.msra.mxu0 0
  %618 = vmatpush.bf16.msra.mxu0 0
  %619 = vmatpush.bf16.msra.mxu0 0
  %620 = vmatpush.bf16.msra.mxu0 0
  %621 = vmatpush.bf16.msra.mxu0 %v330
  %622 = vmatmul.bf16.gmra.mxu0 %v612
  %v623 = vpop.f32.mrf.mxu0
  %v624 = vadd.f32 0.0, %v623
  %v625 = vpop.f32.mrf.mxu0
  %v626 = vadd.f32 0.0, %v625
  %627 = vdwg.mxu0
  %v628 = vadd.f32 %v599, %v624
  %v629 = vadd.f32 %v600, %v626
  %v630 = vtanh.pop %v628
  %v631 = vtanh.pop %v629
  %v632 = vpack.c.bf16 %v630, %v630
  %v633 = vpack.c.bf16 %v631, %v631
  %v636 = vunpack.c.l.b16 %v590
  %v637 = vunpack.c.l.b16 %v591
  %v638 = vpack.c.b16 %v637, %v636
  %v640 = vsel %vm332, %v638, 0
  %642 = vmatpush.bf16.msra.mxu0 0
  %643 = vmatpush.bf16.msra.mxu0 0
  %644 = vmatpush.bf16.msra.mxu0 0
  %645 = vmatpush.bf16.msra.mxu0 0
  %646 = vmatpush.bf16.msra.mxu0 0
  %647 = vmatpush.bf16.msra.mxu0 0
  %648 = vmatpush.bf16.msra.mxu0 0
  %649 = vmatpush.bf16.msra.mxu0 %v360
  %650 = vmatmul.bf16.gmra.mxu0 %v640
  %v651 = vpop.f32.mrf.mxu0
  %v652 = vadd.f32 0.0, %v651
  %v653 = vpop.f32.mrf.mxu0
  %v654 = vadd.f32 0.0, %v653
  %655 = vdwg.mxu0
  %v656 = vadd.f32 %v604, %v652
  %v657 = vadd.f32 %v605, %v654
  %v658 = vtanh.pop %v656
  %v659 = vtanh.pop %v657
  %v660 = vpack.c.bf16 %v658, %v658
  %v661 = vpack.c.bf16 %v659, %v659
  %662 = vst.msk [vmem:[%s596] sm:$0xf] %vm203, %v632
  %663 = vst.msk [vmem:[%s596 + $0x4] sm:$0xf] %vm203, %v633
  %664 = vst.msk [vmem:[%s601] sm:$0xf] %vm203, %v660
  %665 = vst.msk [vmem:[%s601 + $0x4] sm:$0xf] %vm203, %v661
  %s666 = scalar_lea.vmem %s7, 40
  %v667 = vld [vmem:[%s666] sm:$0xf]
  %v668 = vld [vmem:[%s666 + $0x4] sm:$0xf]
  %v669 = vunpack.c.l.bf16 %v667
  %v670 = vunpack.c.l.bf16 %v668
  %s671 = scalar_lea.vmem %s8, 16
  %v672 = vld [vmem:[%s671] sm:$0xf]
  %v673 = vld [vmem:[%s671 + $0x4] sm:$0xf]
  %v674 = vunpack.c.l.bf16 %v672
  %v675 = vunpack.c.l.bf16 %v673
  %v678 = vunpack.c.l.b16 %v632
  %v679 = vunpack.c.l.b16 %v633
  %v680 = vpack.c.b16 %v679, %v678
  %v682 = vsel %vm332, %v680, 0
  %684 = vmatpush.bf16.msra.mxu0 0
  %685 = vmatpush.bf16.msra.mxu0 0
  %686 = vmatpush.bf16.msra.mxu0 0
  %687 = vmatpush.bf16.msra.mxu0 0
  %688 = vmatpush.bf16.msra.mxu0 0
  %689 = vmatpush.bf16.msra.mxu0 0
  %690 = vmatpush.bf16.msra.mxu0 0
  %691 = vmatpush.bf16.msra.mxu0 %v330
  %692 = vmatmul.bf16.gmra.mxu0 %v682
  %v693 = vpop.f32.mrf.mxu0
  %v694 = vadd.f32 0.0, %v693
  %v695 = vpop.f32.mrf.mxu0
  %v696 = vadd.f32 0.0, %v695
  %697 = vdwg.mxu0
  %v698 = vadd.f32 %v669, %v694
  %v699 = vadd.f32 %v670, %v696
  %v700 = vtanh.pop %v698
  %v701 = vtanh.pop %v699
  %v702 = vpack.c.bf16 %v700, %v700
  %v703 = vpack.c.bf16 %v701, %v701
  %v706 = vunpack.c.l.b16 %v660
  %v707 = vunpack.c.l.b16 %v661
  %v708 = vpack.c.b16 %v707, %v706
  %v710 = vsel %vm332, %v708, 0
  %712 = vmatpush.bf16.msra.mxu0 0
  %713 = vmatpush.bf16.msra.mxu0 0
  %714 = vmatpush.bf16.msra.mxu0 0
  %715 = vmatpush.bf16.msra.mxu0 0
  %716 = vmatpush.bf16.msra.mxu0 0
  %717 = vmatpush.bf16.msra.mxu0 0
  %718 = vmatpush.bf16.msra.mxu0 0
  %719 = vmatpush.bf16.msra.mxu0 %v360
  %720 = vmatmul.bf16.gmra.mxu0 %v710
  %v721 = vpop.f32.mrf.mxu0
  %v722 = vadd.f32 0.0, %v721
  %v723 = vpop.f32.mrf.mxu0
  %v724 = vadd.f32 0.0, %v723
  %725 = vdwg.mxu0
  %v726 = vadd.f32 %v674, %v722
  %v727 = vadd.f32 %v675, %v724
  %v728 = vtanh.pop %v726
  %v729 = vtanh.pop %v727
  %v730 = vpack.c.bf16 %v728, %v728
  %v731 = vpack.c.bf16 %v729, %v729
  %732 = vst.msk [vmem:[%s666] sm:$0xf] %vm203, %v702
  %733 = vst.msk [vmem:[%s666 + $0x4] sm:$0xf] %vm203, %v703
  %734 = vst.msk [vmem:[%s671] sm:$0xf] %vm203, %v730
  %735 = vst.msk [vmem:[%s671 + $0x4] sm:$0xf] %vm203, %v731
  %s736 = scalar_lea.vmem %s7, 48
  %v737 = vld [vmem:[%s736] sm:$0xf]
  %v738 = vld [vmem:[%s736 + $0x4] sm:$0xf]
  %v739 = vunpack.c.l.bf16 %v737
  %v740 = vunpack.c.l.bf16 %v738
  %s741 = scalar_lea.vmem %s8, 8
  %v742 = vld [vmem:[%s741] sm:$0xf]
  %v743 = vld [vmem:[%s741 + $0x4] sm:$0xf]
  %v744 = vunpack.c.l.bf16 %v742
  %v745 = vunpack.c.l.bf16 %v743
  %v748 = vunpack.c.l.b16 %v702
  %v749 = vunpack.c.l.b16 %v703
  %v750 = vpack.c.b16 %v749, %v748
  %v752 = vsel %vm332, %v750, 0
  %754 = vmatpush.bf16.msra.mxu0 0
  %755 = vmatpush.bf16.msra.mxu0 0
  %756 = vmatpush.bf16.msra.mxu0 0
  %757 = vmatpush.bf16.msra.mxu0 0
  %758 = vmatpush.bf16.msra.mxu0 0
  %759 = vmatpush.bf16.msra.mxu0 0
  %760 = vmatpush.bf16.msra.mxu0 0
  %761 = vmatpush.bf16.msra.mxu0 %v330
  %762 = vmatmul.bf16.gmra.mxu0 %v752
  %v763 = vpop.f32.mrf.mxu0
  %v764 = vadd.f32 0.0, %v763
  %v765 = vpop.f32.mrf.mxu0
  %v766 = vadd.f32 0.0, %v765
  %767 = vdwg.mxu0
  %v768 = vadd.f32 %v739, %v764
  %v769 = vadd.f32 %v740, %v766
  %v770 = vtanh.pop %v768
  %v771 = vtanh.pop %v769
  %v772 = vpack.c.bf16 %v770, %v770
  %v773 = vpack.c.bf16 %v771, %v771
  %v776 = vunpack.c.l.b16 %v730
  %v777 = vunpack.c.l.b16 %v731
  %v778 = vpack.c.b16 %v777, %v776
  %v780 = vsel %vm332, %v778, 0
  %782 = vmatpush.bf16.msra.mxu0 0
  %783 = vmatpush.bf16.msra.mxu0 0
  %784 = vmatpush.bf16.msra.mxu0 0
  %785 = vmatpush.bf16.msra.mxu0 0
  %786 = vmatpush.bf16.msra.mxu0 0
  %787 = vmatpush.bf16.msra.mxu0 0
  %788 = vmatpush.bf16.msra.mxu0 0
  %789 = vmatpush.bf16.msra.mxu0 %v360
  %790 = vmatmul.bf16.gmra.mxu0 %v780
  %v791 = vpop.f32.mrf.mxu0
  %v792 = vadd.f32 0.0, %v791
  %v793 = vpop.f32.mrf.mxu0
  %v794 = vadd.f32 0.0, %v793
  %795 = vdwg.mxu0
  %v796 = vadd.f32 %v744, %v792
  %v797 = vadd.f32 %v745, %v794
  %v798 = vtanh.pop %v796
  %v799 = vtanh.pop %v797
  %v800 = vpack.c.bf16 %v798, %v798
  %v801 = vpack.c.bf16 %v799, %v799
  %802 = vst.msk [vmem:[%s736] sm:$0xf] %vm203, %v772
  %803 = vst.msk [vmem:[%s736 + $0x4] sm:$0xf] %vm203, %v773
  %804 = vst.msk [vmem:[%s741] sm:$0xf] %vm203, %v800
  %805 = vst.msk [vmem:[%s741 + $0x4] sm:$0xf] %vm203, %v801
  %s806 = scalar_lea.vmem %s7, 56
  %v807 = vld [vmem:[%s806] sm:$0xf]
  %v808 = vld [vmem:[%s806 + $0x4] sm:$0xf]
  %v809 = vunpack.c.l.bf16 %v807
  %v810 = vunpack.c.l.bf16 %v808
  %v811 = vld [vmem:[%s8] sm:$0xf]
  %v812 = vld [vmem:[%s8 + $0x4] sm:$0xf]
  %v813 = vunpack.c.l.bf16 %v811
  %v814 = vunpack.c.l.bf16 %v812
  %v817 = vunpack.c.l.b16 %v772
  %v818 = vunpack.c.l.b16 %v773
  %v819 = vpack.c.b16 %v818, %v817
  %v821 = vsel %vm332, %v819, 0
  %823 = vmatpush.bf16.msra.mxu0 0
  %824 = vmatpush.bf16.msra.mxu0 0
  %825 = vmatpush.bf16.msra.mxu0 0
  %826 = vmatpush.bf16.msra.mxu0 0
  %827 = vmatpush.bf16.msra.mxu0 0
  %828 = vmatpush.bf16.msra.mxu0 0
  %829 = vmatpush.bf16.msra.mxu0 0
  %830 = vmatpush.bf16.msra.mxu0 %v330
  %831 = vmatmul.bf16.gmra.mxu0 %v821
  %v832 = vpop.f32.mrf.mxu0
  %v833 = vadd.f32 0.0, %v832
  %v834 = vpop.f32.mrf.mxu0
  %v835 = vadd.f32 0.0, %v834
  %836 = vdwg.mxu0
  %v837 = vadd.f32 %v809, %v833
  %v838 = vadd.f32 %v810, %v835
  %v839 = vtanh.pop %v837
  %v840 = vtanh.pop %v838
  %v841 = vpack.c.bf16 %v839, %v839
  %v842 = vpack.c.bf16 %v840, %v840
  %v845 = vunpack.c.l.b16 %v800
  %v846 = vunpack.c.l.b16 %v801
  %v847 = vpack.c.b16 %v846, %v845
  %v849 = vsel %vm332, %v847, 0
  %851 = vmatpush.bf16.msra.mxu0 0
  %852 = vmatpush.bf16.msra.mxu0 0
  %853 = vmatpush.bf16.msra.mxu0 0
  %854 = vmatpush.bf16.msra.mxu0 0
  %855 = vmatpush.bf16.msra.mxu0 0
  %856 = vmatpush.bf16.msra.mxu0 0
  %857 = vmatpush.bf16.msra.mxu0 0
  %858 = vmatpush.bf16.msra.mxu0 %v360
  %859 = vmatmul.bf16.gmra.mxu0 %v849
  %v860 = vpop.f32.mrf.mxu0
  %v861 = vadd.f32 0.0, %v860
  %v862 = vpop.f32.mrf.mxu0
  %v863 = vadd.f32 0.0, %v862
  %864 = vdwg.mxu0
  %v865 = vadd.f32 %v813, %v861
  %v866 = vadd.f32 %v814, %v863
  %v867 = vtanh.pop %v865
  %v868 = vtanh.pop %v866
  %v869 = vpack.c.bf16 %v867, %v867
  %v870 = vpack.c.bf16 %v868, %v868
  %871 = vst.msk [vmem:[%s806] sm:$0xf] %vm203, %v841
  %872 = vst.msk [vmem:[%s806 + $0x4] sm:$0xf] %vm203, %v842
  %873 = vst.msk [vmem:[%s8] sm:$0xf] %vm203, %v869
  %874 = vst.msk [vmem:[%s8 + $0x4] sm:$0xf] %vm203, %v870
  // Predicated region
  $region30: #{_lambda_.2} parent=0 // pred_check
    _
  $region31: #{_lambda_.2} parent=0 // pred_check_branch
    %876 = sbr.rel (0) target = $region33
  $region32: #{_lambda_.2} parent=0 // pred_region
    _
  $region33: #{_lambda_.2} parent=0 // pred_fallthru
    _
  // Predicated region
  $region34: #{_lambda_.2} parent=0 // pred_check
    _
  $region35: #{_lambda_.2} parent=0 // pred_check_branch
    %878 = sbr.rel (0) target = $region37
  $region36: #{_lambda_.2} parent=0 // pred_region
    _
  $region37: #{_lambda_.2} parent=0 // pred_fallthru
    _
  // Predicated region
  $region38: #{_lambda_.2} parent=0 // pred_check
    _
  $region39: #{_lambda_.2} parent=0 // pred_check_branch
    %880 = sbr.rel (0) target = $region41
  $region40: #{_lambda_.2} parent=0 // pred_region
    _
  $region41: #{_lambda_.2} parent=0 // pred_fallthru
    _
  // Predicated region
  $region42: #{_lambda_.2} parent=0 // pred_check
    _
  $region43: #{_lambda_.2} parent=0 // pred_check_branch
    %882 = sbr.rel (0) target = $region45
  $region44: #{_lambda_.2} parent=0 // pred_region
    _
  $region45: #{_lambda_.2} parent=0 // pred_fallthru
    _

</llo_original>
